<compile_context>
chip_gen: v7x
topology: tpu7x:2x2x1
jax: 0.10.0
libtpu: 0.0.40
codegen_flags: <defaults>
</compile_context>

<pallas_src>
import functools

import jax
import jax.numpy as jnp
from jax import lax
from jax.experimental import pallas as pl
from jax.experimental.pallas import tpu as pltpu


def _attention_kernel(x_q_ref, x_kv_ref, wq_ref, wkv_ref, wo_ref, bo_ref,
                      o_ref, k_scr, v_scr, acc_scr, *,
                      heads, dim_head, approx_recip):
    qi = pl.program_id(1)
    dh = dim_head
    inner = heads * dh
    n = x_kv_ref.shape[1]
    cdt = x_q_ref.dtype  # MXU input dtype (fp32 or bf16); accumulation is fp32

    # ---- Stage K/V for the whole sequence once per batch (q-tile 0 only). ----
    @pl.when(qi == 0)
    def _stage_kv():
        kv = jnp.dot(x_kv_ref[0], wkv_ref[...],
                     preferred_element_type=jnp.float32)            # (n, 2*inner) f32
        kv = kv.astype(cdt)                                         # hoisted single cast
        for h in range(heads):
            k_scr[h] = kv[:, h * dh:(h + 1) * dh]                   # (n, dh)
            v_scr[h] = kv[:, inner + h * dh:inner + (h + 1) * dh]   # (n, dh)

    # ---- Q projection for this tile of query rows (scale pre-folded). ----
    q = jnp.dot(x_q_ref[0], wq_ref[...],
                preferred_element_type=jnp.float32).astype(cdt)     # (tq, inner)

    # Per-head attention; each head's output lands in the resident accumulator.
    # `heads` is a small compile-time constant; for very large head counts use
    # lax.fori_loop(..., unroll=True) to bound vreg live ranges.
    for h in range(heads):
        q_h = q[:, h * dh:(h + 1) * dh]                             # (tq, dh)
        # Scores: contract dh vs dh directly -- no explicit k.T transpose.
        s = lax.dot_general(q_h, k_scr[h],
                            dimension_numbers=(((1,), (1,)), ((), ())),
                            preferred_element_type=jnp.float32)     # (tq, n) f32
        # Numerically stable softmax in fp32; reciprocal goes to the EUP slot.
        s = s - jnp.max(s, axis=-1, keepdims=True)
        p = jnp.exp(s)
        denom = jnp.sum(p, axis=-1, keepdims=True)
        if approx_recip:
            attn = p * pl.reciprocal(denom, approx=True)
        else:
            attn = p / denom
        o_h = lax.dot_general(attn.astype(cdt), v_scr[h],
                              dimension_numbers=(((1,), (0,)), ((), ())),
                              preferred_element_type=jnp.float32)   # (tq, dh) f32
        acc_scr[:, h * dh:(h + 1) * dh] = o_h.astype(cdt)           # 'b h n d -> b n (h d)'

    # Single output projection per q tile (K = inner), bias in f32, one store.
    out = jnp.dot(acc_scr[...], wo_ref[...], preferred_element_type=jnp.float32)
    out = out + bo_ref[...].astype(jnp.float32)
    o_ref[0] = out.astype(o_ref.dtype)


def _vmem_limit_bytes(n, dim, inner, tq, heads, dh, compute_dtype, out_dtype):
    """Tile budget with headroom (review item: set vmem_limit_bytes explicitly)."""
    cb = jnp.dtype(compute_dtype).itemsize
    ob = jnp.dtype(out_dtype).itemsize
    pad = lambda x: max(x, 128)                       # crude minor-dim lane padding
    operands = 2 * (tq * dim + n * dim) * cb          # x_q / x_kv, double-buffered
    operands += 2 * tq * dim * ob                     # output tile, double-buffered
    weights = 2 * (dim * inner + dim * 2 * inner + inner * dim + dim) * cb
    scratch = 2 * heads * n * pad(dh) * cb            # staged K and V
    scratch += tq * pad(inner) * cb                   # head-output accumulator
    temps = (n * 2 * inner + tq * inner + 2 * tq * pad(n) + tq * dim) * 4  # f32 temporaries
    est = operands + weights + scratch + temps
    # ~25% headroom + slack; never below the 32 MiB default, safe on all chips.
    return max(32 * 1024 * 1024, int(est * 1.25) + (4 << 20))


def attention_pallas(x, w_qkv_t, w_out_t, b_out, *, heads, dim_head, scale,
                     compute_dtype=jnp.float32, block_q=128,
                     approx_softmax_recip=True):
    """
    x        : (b, n, dim)
    w_qkv_t  : (dim, 3*inner)  transposed to_qkv weight, column order [Q | K | V],
                               head-major within each block (this is exactly the
                               transpose of the PyTorch to_qkv.weight and matches
                               the 'b n (h d)' rearrange).
    w_out_t  : (inner, dim)    transposed to_out weight
    b_out    : (dim,)          to_out bias
    compute_dtype : MXU input dtype (use jnp.bfloat16 on v6e/v7x; f32 accumulate).
    block_q  : query-row tile; re-derive per chip (<=128-256 on v7x).
    approx_softmax_recip : EUP approx reciprocal for the softmax denominator.
                           Set False if exact row sums are needed (training).
    """
    b, n, dim = x.shape
    inner = heads * dim_head
    assert w_qkv_t.shape == (dim, 3 * inner), "to_qkv weight must be (dim, 3*inner)"
    assert w_out_t.shape == (inner, dim), "to_out weight must be (inner, dim)"
    assert b_out.shape == (dim,), "to_out bias must be (dim,)"

    tq = min(block_q, n)
    assert n % tq == 0, "seq length must be divisible by the query tile"
    assert tq == n or tq % 8 == 0, "query tile must be a multiple of 8 sublanes"
    num_q_tiles = n // tq

    # Split the fused weight into Q (softmax scale folded in, compile-time) and K|V.
    w_q = (w_qkv_t[:, :inner] * scale).astype(compute_dtype)      # (dim, inner)
    w_kv = w_qkv_t[:, inner:].astype(compute_dtype)               # (dim, 2*inner)

    x_c = x.astype(compute_dtype)
    wo_c = w_out_t.astype(compute_dtype)
    bo = b_out.reshape(1, dim).astype(jnp.float32)

    kernel = functools.partial(_attention_kernel, heads=heads, dim_head=dim_head,
                               approx_recip=approx_softmax_recip)

    grid_spec = pltpu.PrefetchScalarGridSpec(
        num_scalar_prefetch=0,
        grid=(b, num_q_tiles),
        in_specs=[
            pl.BlockSpec((1, tq, dim), lambda bi, qi: (bi, qi, 0)),   # x, query rows
            pl.BlockSpec((1, n, dim), lambda bi, qi: (bi, 0, 0)),     # x, full seq (K/V)
            pl.BlockSpec((dim, inner), lambda bi, qi: (0, 0)),        # W_q (scaled)
            pl.BlockSpec((dim, 2 * inner), lambda bi, qi: (0, 0)),    # W_kv
            pl.BlockSpec((inner, dim), lambda bi, qi: (0, 0)),        # W_out
            pl.BlockSpec((1, dim), lambda bi, qi: (0, 0)),            # bias
        ],
        out_specs=pl.BlockSpec((1, tq, dim), lambda bi, qi: (bi, qi, 0)),
        scratch_shapes=[
            pltpu.VMEM((heads, n, dim_head), compute_dtype),          # staged K
            pltpu.VMEM((heads, n, dim_head), compute_dtype),          # staged V
            pltpu.VMEM((tq, inner), compute_dtype),                   # head-output acc
        ],
    )

    vmem_bytes = _vmem_limit_bytes(n, dim, inner, tq, heads, dim_head,
                                   compute_dtype, x.dtype)

    return pl.pallas_call(
        kernel,
        out_shape=jax.ShapeDtypeStruct((b, n, dim), x.dtype),
        grid_spec=grid_spec,
        compiler_params=pltpu.CompilerParams(
            # batch shards across TensorCores (v7x); the q-tile axis stays
            # "arbitrary" because the K/V scratch staged at q-tile 0 is reused
            # by later q tiles of the same batch on the same core.
            dimension_semantics=("parallel", "arbitrary"),
            vmem_limit_bytes=vmem_bytes,
        ),
    )(x_c, x_c, w_q, w_kv, wo_c, bo)


def attention_ref(x, w_qkv_t, w_out_t, b_out, *, heads, dim_head, scale):
    """Pure-JAX reference matching the PyTorch forward semantics."""
    b, n, dim = x.shape
    inner = heads * dim_head
    qkv = x @ w_qkv_t                                     # (b, n, 3*inner)
    q, k, v = jnp.split(qkv, 3, axis=-1)                  # each (b, n, inner)

    def to_heads(t):  # 'b n (h d) -> b h n d'
        return t.reshape(b, n, heads, dim_head).transpose(0, 2, 1, 3)

    q, k, v = map(to_heads, (q, k, v))
    dots = jnp.einsum("bhid,bhjd->bhij", q, k) * scale
    attn = jax.nn.softmax(dots, axis=-1)
    out = jnp.einsum("bhij,bhjd->bhid", attn, v)
    out = out.transpose(0, 2, 1, 3).reshape(b, n, inner)  # 'b h n d -> b n (h d)'
    return out @ w_out_t + b_out                          # Dropout(p=0) is identity


if __name__ == "__main__":
    # Small, module-consistent shapes; block_q=8 exercises multiple q tiles and
    # the once-per-batch K/V staging path.
    batch, seq, dim = 2, 16, 32
    heads, dim_head = 4, 16
    inner = heads * dim_head
    scale = dim_head ** (-0.5)

    key = jax.random.PRNGKey(0)
    kx, kqkv, kwo, kbo = jax.random.split(key, 4)

    x = jax.random.normal(kx, (batch, seq, dim), dtype=jnp.float32)
    # to_qkv: Linear(dim, 3*inner, bias=False); stored transposed (dim, 3*inner)
    w_qkv_t = jax.random.normal(kqkv, (dim, 3 * inner), dtype=jnp.float32) * 0.05
    # to_out: Linear(inner, dim) with bias; stored transposed (inner, dim)
    w_out_t = jax.random.normal(kwo, (inner, dim), dtype=jnp.float32) * 0.05
    b_out = jax.random.normal(kbo, (dim,), dtype=jnp.float32) * 0.05

    out = attention_pallas(x, w_qkv_t, w_out_t, b_out,
                           heads=heads, dim_head=dim_head, scale=scale,
                           compute_dtype=jnp.float32, block_q=8)
    out = jax.block_until_ready(out)

    ref = attention_ref(x, w_qkv_t, w_out_t, b_out,
                        heads=heads, dim_head=dim_head, scale=scale)

    assert out.shape == (batch, seq, dim)
    assert jnp.allclose(out, ref, atol=2e-3, rtol=2e-3), "mismatch vs reference"
    print("KERNEL_OK")
</pallas_src>

<mosaic_0001>
module attributes {stable_mosaic.version = 11 : i64} {
  func.func @_attention_kernel(%arg0: i32, %arg1: i32, %arg2: memref<1x8x32xf32, #tpu.memory_space<vmem>>, %arg3: memref<1x16x32xf32, #tpu.memory_space<vmem>>, %arg4: memref<32x64xf32, #tpu.memory_space<vmem>>, %arg5: memref<32x128xf32, #tpu.memory_space<vmem>>, %arg6: memref<64x32xf32, #tpu.memory_space<vmem>>, %arg7: memref<1x32xf32, #tpu.memory_space<vmem>>, %arg8: memref<1x8x32xf32, #tpu.memory_space<vmem>>, %arg9: memref<4x16x16xf32, #tpu.memory_space<vmem>>, %arg10: memref<4x16x16xf32, #tpu.memory_space<vmem>>, %arg11: memref<8x64xf32, #tpu.memory_space<vmem>>) attributes {dimension_semantics = [#tpu.dimension_semantics<parallel>, #tpu.dimension_semantics<arbitrary>], iteration_bounds = array<i64: 2, 2>, scalar_prefetch = 0 : i64, scratch_operands = 3 : i64, tpu.core_type = #tpu.core_type<tc>, window_params = [{transform_indices = @transform_0, window_bounds = array<i64: 1, 8, 32>}, {transform_indices = @transform_1, window_bounds = array<i64: 1, 16, 32>}, {pipeline_mode = #tpu.pipeline_mode<synchronous>, transform_indices = @transform_2, window_bounds = array<i64: 32, 64>}, {pipeline_mode = #tpu.pipeline_mode<synchronous>, transform_indices = @transform_3, window_bounds = array<i64: 32, 128>}, {pipeline_mode = #tpu.pipeline_mode<synchronous>, transform_indices = @transform_4, window_bounds = array<i64: 64, 32>}, {pipeline_mode = #tpu.pipeline_mode<synchronous>, transform_indices = @transform_5, window_bounds = array<i64: 1, 32>}, {transform_indices = @transform_6, window_bounds = array<i64: 1, 8, 32>}]} {
    %c0_i32 = arith.constant 0 : i32
    %0 = arith.cmpi eq, %arg1, %c0_i32 : i32
    %1 = arith.extui %0 : i1 to i32
    %c0_i32_0 = arith.constant 0 : i32
    %2 = arith.cmpi ne, %1, %c0_i32_0 : i32
    scf.if %2 {
      %c0_57 = arith.constant 0 : index
      %c0_58 = arith.constant 0 : index
      %c0_59 = arith.constant 0 : index
      %88 = vector.load %arg3[%c0_57, %c0_58, %c0_59] : memref<1x16x32xf32, #tpu.memory_space<vmem>>, vector<1x16x32xf32>
      %89 = vector.shape_cast %88 : vector<1x16x32xf32> to vector<16x32xf32>
      %c0_60 = arith.constant 0 : index
      %c0_61 = arith.constant 0 : index
      %90 = vector.load %arg5[%c0_60, %c0_61] : memref<32x128xf32, #tpu.memory_space<vmem>>, vector<32x128xf32>
      %cst_62 = arith.constant dense<0.000000e+00> : vector<16x128xf32>
      %91 = tpu.matmul %89, %90, %cst_62 {dimension_numbers = #tpu.dot_dimension_numbers<[1], [0], [0], [1], [0, 0, 1, 1], [], []>} : vector<16x32xf32>, vector<32x128xf32>, vector<16x128xf32> -> vector<16x128xf32>
      %92 = vector.extract_strided_slice %91 {offsets = [0, 0], sizes = [16, 16], strides = [1, 1]} : vector<16x128xf32> to vector<16x16xf32>
      %c0_63 = arith.constant 0 : index
      %c0_64 = arith.constant 0 : index
      %c0_65 = arith.constant 0 : index
      %93 = vector.load %arg9[%c0_63, %c0_64, %c0_65] : memref<4x16x16xf32, #tpu.memory_space<vmem>>, vector<1x16x16xf32>
      %94 = vector.shape_cast %93 : vector<1x16x16xf32> to vector<16x16xf32>
      %95 = vector.shape_cast %92 : vector<16x16xf32> to vector<1x16x16xf32>
      tpu.vector_store %arg9[%c0_63, %c0_64, %c0_65], %95 {strides = array<i32>} : memref<4x16x16xf32, #tpu.memory_space<vmem>>, vector<1x16x16xf32>,
      %96 = vector.extract_strided_slice %91 {offsets = [0, 64], sizes = [16, 16], strides = [1, 1]} : vector<16x128xf32> to vector<16x16xf32>
      %c0_66 = arith.constant 0 : index
      %c0_67 = arith.constant 0 : index
      %c0_68 = arith.constant 0 : index
      %97 = vector.load %arg10[%c0_66, %c0_67, %c0_68] : memref<4x16x16xf32, #tpu.memory_space<vmem>>, vector<1x16x16xf32>
      %98 = vector.shape_cast %97 : vector<1x16x16xf32> to vector<16x16xf32>
      %99 = vector.shape_cast %96 : vector<16x16xf32> to vector<1x16x16xf32>
      tpu.vector_store %arg10[%c0_66, %c0_67, %c0_68], %99 {strides = array<i32>} : memref<4x16x16xf32, #tpu.memory_space<vmem>>, vector<1x16x16xf32>,
      %100 = vector.extract_strided_slice %91 {offsets = [0, 16], sizes = [16, 16], strides = [1, 1]} : vector<16x128xf32> to vector<16x16xf32>
      %c1_69 = arith.constant 1 : index
      %c0_70 = arith.constant 0 : index
      %c0_71 = arith.constant 0 : index
      %101 = vector.load %arg9[%c1_69, %c0_70, %c0_71] : memref<4x16x16xf32, #tpu.memory_space<vmem>>, vector<1x16x16xf32>
      %102 = vector.shape_cast %101 : vector<1x16x16xf32> to vector<16x16xf32>
      %103 = vector.shape_cast %100 : vector<16x16xf32> to vector<1x16x16xf32>
      tpu.vector_store %arg9[%c1_69, %c0_70, %c0_71], %103 {strides = array<i32>} : memref<4x16x16xf32, #tpu.memory_space<vmem>>, vector<1x16x16xf32>,
      %104 = vector.extract_strided_slice %91 {offsets = [0, 80], sizes = [16, 16], strides = [1, 1]} : vector<16x128xf32> to vector<16x16xf32>
      %c1_72 = arith.constant 1 : index
      %c0_73 = arith.constant 0 : index
      %c0_74 = arith.constant 0 : index
      %105 = vector.load %arg10[%c1_72, %c0_73, %c0_74] : memref<4x16x16xf32, #tpu.memory_space<vmem>>, vector<1x16x16xf32>
      %106 = vector.shape_cast %105 : vector<1x16x16xf32> to vector<16x16xf32>
      %107 = vector.shape_cast %104 : vector<16x16xf32> to vector<1x16x16xf32>
      tpu.vector_store %arg10[%c1_72, %c0_73, %c0_74], %107 {strides = array<i32>} : memref<4x16x16xf32, #tpu.memory_space<vmem>>, vector<1x16x16xf32>,
      %108 = vector.extract_strided_slice %91 {offsets = [0, 32], sizes = [16, 16], strides = [1, 1]} : vector<16x128xf32> to vector<16x16xf32>
      %c2_75 = arith.constant 2 : index
      %c0_76 = arith.constant 0 : index
      %c0_77 = arith.constant 0 : index
      %109 = vector.load %arg9[%c2_75, %c0_76, %c0_77] : memref<4x16x16xf32, #tpu.memory_space<vmem>>, vector<1x16x16xf32>
      %110 = vector.shape_cast %109 : vector<1x16x16xf32> to vector<16x16xf32>
      %111 = vector.shape_cast %108 : vector<16x16xf32> to vector<1x16x16xf32>
      tpu.vector_store %arg9[%c2_75, %c0_76, %c0_77], %111 {strides = array<i32>} : memref<4x16x16xf32, #tpu.memory_space<vmem>>, vector<1x16x16xf32>,
      %112 = vector.extract_strided_slice %91 {offsets = [0, 96], sizes = [16, 16], strides = [1, 1]} : vector<16x128xf32> to vector<16x16xf32>
      %c2_78 = arith.constant 2 : index
      %c0_79 = arith.constant 0 : index
      %c0_80 = arith.constant 0 : index
      %113 = vector.load %arg10[%c2_78, %c0_79, %c0_80] : memref<4x16x16xf32, #tpu.memory_space<vmem>>, vector<1x16x16xf32>
      %114 = vector.shape_cast %113 : vector<1x16x16xf32> to vector<16x16xf32>
      %115 = vector.shape_cast %112 : vector<16x16xf32> to vector<1x16x16xf32>
      tpu.vector_store %arg10[%c2_78, %c0_79, %c0_80], %115 {strides = array<i32>} : memref<4x16x16xf32, #tpu.memory_space<vmem>>, vector<1x16x16xf32>,
      %116 = vector.extract_strided_slice %91 {offsets = [0, 48], sizes = [16, 16], strides = [1, 1]} : vector<16x128xf32> to vector<16x16xf32>
      %c3_81 = arith.constant 3 : index
      %c0_82 = arith.constant 0 : index
      %c0_83 = arith.constant 0 : index
      %117 = vector.load %arg9[%c3_81, %c0_82, %c0_83] : memref<4x16x16xf32, #tpu.memory_space<vmem>>, vector<1x16x16xf32>
      %118 = vector.shape_cast %117 : vector<1x16x16xf32> to vector<16x16xf32>
      %119 = vector.shape_cast %116 : vector<16x16xf32> to vector<1x16x16xf32>
      tpu.vector_store %arg9[%c3_81, %c0_82, %c0_83], %119 {strides = array<i32>} : memref<4x16x16xf32, #tpu.memory_space<vmem>>, vector<1x16x16xf32>,
      %120 = vector.extract_strided_slice %91 {offsets = [0, 112], sizes = [16, 16], strides = [1, 1]} : vector<16x128xf32> to vector<16x16xf32>
      %c3_84 = arith.constant 3 : index
      %c0_85 = arith.constant 0 : index
      %c0_86 = arith.constant 0 : index
      %121 = vector.load %arg10[%c3_84, %c0_85, %c0_86] : memref<4x16x16xf32, #tpu.memory_space<vmem>>, vector<1x16x16xf32>
      %122 = vector.shape_cast %121 : vector<1x16x16xf32> to vector<16x16xf32>
      %123 = vector.shape_cast %120 : vector<16x16xf32> to vector<1x16x16xf32>
      tpu.vector_store %arg10[%c3_84, %c0_85, %c0_86], %123 {strides = array<i32>} : memref<4x16x16xf32, #tpu.memory_space<vmem>>, vector<1x16x16xf32>,
    } else {
    }
    %c0 = arith.constant 0 : index
    %c0_1 = arith.constant 0 : index
    %c0_2 = arith.constant 0 : index
    %3 = vector.load %arg2[%c0, %c0_1, %c0_2] : memref<1x8x32xf32, #tpu.memory_space<vmem>>, vector<1x8x32xf32>
    %4 = vector.shape_cast %3 : vector<1x8x32xf32> to vector<8x32xf32>
    %c0_3 = arith.constant 0 : index
    %c0_4 = arith.constant 0 : index
    %5 = vector.load %arg4[%c0_3, %c0_4] : memref<32x64xf32, #tpu.memory_space<vmem>>, vector<32x64xf32>
    %cst = arith.constant dense<0.000000e+00> : vector<8x64xf32>
    %6 = tpu.matmul %4, %5, %cst {dimension_numbers = #tpu.dot_dimension_numbers<[1], [0], [0], [1], [0, 0, 1, 1], [], []>} : vector<8x32xf32>, vector<32x64xf32>, vector<8x64xf32> -> vector<8x64xf32>
    %7 = vector.extract_strided_slice %6 {offsets = [0, 0], sizes = [8, 16], strides = [1, 1]} : vector<8x64xf32> to vector<8x16xf32>
    %c0_5 = arith.constant 0 : index
    %c0_6 = arith.constant 0 : index
    %c0_7 = arith.constant 0 : index
    %8 = vector.load %arg9[%c0_5, %c0_6, %c0_7] : memref<4x16x16xf32, #tpu.memory_space<vmem>>, vector<1x16x16xf32>
    %9 = vector.shape_cast %8 : vector<1x16x16xf32> to vector<16x16xf32>
    %cst_8 = arith.constant dense<0.000000e+00> : vector<8x16xf32>
    %10 = tpu.matmul %7, %9, %cst_8 {dimension_numbers = #tpu.dot_dimension_numbers<[1], [1], [0], [0], [0, 0, 1, 0], [], []>} : vector<8x16xf32>, vector<16x16xf32>, vector<8x16xf32> -> vector<8x16xf32>
    %cst_9 = arith.constant dense<0xFF800000> : vector<8xf32>
    %11 = vector.multi_reduction <maximumf>, %10, %cst_9 [1] : vector<8x16xf32> to vector<8xf32>
    %12 = vector.shape_cast %11 : vector<8xf32> to vector<8x1xf32>
    %13 = vector.broadcast %12 : vector<8x1xf32> to vector<8x16xf32>
    %14 = arith.subf %10, %13 : vector<8x16xf32>
    %15 = math.exp %14 : vector<8x16xf32>
    %cst_10 = arith.constant dense<0.000000e+00> : vector<8xf32>
    %16 = vector.multi_reduction <add>, %15, %cst_10 [1] : vector<8x16xf32> to vector<8xf32>
    %17 = vector.shape_cast %16 : vector<8xf32> to vector<8x1xf32>
    %18 = tpu.reciprocal %17 {approx = true} : vector<8x1xf32> -> vector<8x1xf32>
    %19 = vector.broadcast %18 : vector<8x1xf32> to vector<8x16xf32>
    %20 = arith.mulf %15, %19 : vector<8x16xf32>
    %c0_11 = arith.constant 0 : index
    %c0_12 = arith.constant 0 : index
    %c0_13 = arith.constant 0 : index
    %21 = vector.load %arg10[%c0_11, %c0_12, %c0_13] : memref<4x16x16xf32, #tpu.memory_space<vmem>>, vector<1x16x16xf32>
    %22 = vector.shape_cast %21 : vector<1x16x16xf32> to vector<16x16xf32>
    %cst_14 = arith.constant dense<0.000000e+00> : vector<8x16xf32>
    %23 = tpu.matmul %20, %22, %cst_14 {dimension_numbers = #tpu.dot_dimension_numbers<[1], [0], [0], [1], [0, 0, 1, 1], [], []>} : vector<8x16xf32>, vector<16x16xf32>, vector<8x16xf32> -> vector<8x16xf32>
    %c0_15 = arith.constant 0 : index
    %c0_16 = arith.constant 0 : index
    %24 = vector.load %arg11[%c0_15, %c0_16] : memref<8x64xf32, #tpu.memory_space<vmem>>, vector<8x16xf32>
    tpu.vector_store %arg11[%c0_15, %c0_16], %23 {strides = array<i32>} : memref<8x64xf32, #tpu.memory_space<vmem>>, vector<8x16xf32>,
    %25 = vector.extract_strided_slice %6 {offsets = [0, 16], sizes = [8, 16], strides = [1, 1]} : vector<8x64xf32> to vector<8x16xf32>
    %c1 = arith.constant 1 : index
    %c0_17 = arith.constant 0 : index
    %c0_18 = arith.constant 0 : index
    %26 = vector.load %arg9[%c1, %c0_17, %c0_18] : memref<4x16x16xf32, #tpu.memory_space<vmem>>, vector<1x16x16xf32>
    %27 = vector.shape_cast %26 : vector<1x16x16xf32> to vector<16x16xf32>
    %cst_19 = arith.constant dense<0.000000e+00> : vector<8x16xf32>
    %28 = tpu.matmul %25, %27, %cst_19 {dimension_numbers = #tpu.dot_dimension_numbers<[1], [1], [0], [0], [0, 0, 1, 0], [], []>} : vector<8x16xf32>, vector<16x16xf32>, vector<8x16xf32> -> vector<8x16xf32>
    %cst_20 = arith.constant dense<0xFF800000> : vector<8xf32>
    %29 = vector.multi_reduction <maximumf>, %28, %cst_20 [1] : vector<8x16xf32> to vector<8xf32>
    %30 = vector.shape_cast %29 : vector<8xf32> to vector<8x1xf32>
    %31 = vector.broadcast %30 : vector<8x1xf32> to vector<8x16xf32>
    %32 = arith.subf %28, %31 : vector<8x16xf32>
    %33 = math.exp %32 : vector<8x16xf32>
    %cst_21 = arith.constant dense<0.000000e+00> : vector<8xf32>
    %34 = vector.multi_reduction <add>, %33, %cst_21 [1] : vector<8x16xf32> to vector<8xf32>
    %35 = vector.shape_cast %34 : vector<8xf32> to vector<8x1xf32>
    %36 = tpu.reciprocal %35 {approx = true} : vector<8x1xf32> -> vector<8x1xf32>
    %37 = vector.broadcast %36 : vector<8x1xf32> to vector<8x16xf32>
    %38 = arith.mulf %33, %37 : vector<8x16xf32>
    %c1_22 = arith.constant 1 : index
    %c0_23 = arith.constant 0 : index
    %c0_24 = arith.constant 0 : index
    %39 = vector.load %arg10[%c1_22, %c0_23, %c0_24] : memref<4x16x16xf32, #tpu.memory_space<vmem>>, vector<1x16x16xf32>
    %40 = vector.shape_cast %39 : vector<1x16x16xf32> to vector<16x16xf32>
    %cst_25 = arith.constant dense<0.000000e+00> : vector<8x16xf32>
    %41 = tpu.matmul %38, %40, %cst_25 {dimension_numbers = #tpu.dot_dimension_numbers<[1], [0], [0], [1], [0, 0, 1, 1], [], []>} : vector<8x16xf32>, vector<16x16xf32>, vector<8x16xf32> -> vector<8x16xf32>
    %c0_26 = arith.constant 0 : index
    %c16 = arith.constant 16 : index
    %42 = vector.load %arg11[%c0_26, %c16] : memref<8x64xf32, #tpu.memory_space<vmem>>, vector<8x16xf32>
    tpu.vector_store %arg11[%c0_26, %c16], %41 {strides = array<i32>} : memref<8x64xf32, #tpu.memory_space<vmem>>, vector<8x16xf32>,
    %43 = vector.extract_strided_slice %6 {offsets = [0, 32], sizes = [8, 16], strides = [1, 1]} : vector<8x64xf32> to vector<8x16xf32>
    %c2 = arith.constant 2 : index
    %c0_27 = arith.constant 0 : index
    %c0_28 = arith.constant 0 : index
    %44 = vector.load %arg9[%c2, %c0_27, %c0_28] : memref<4x16x16xf32, #tpu.memory_space<vmem>>, vector<1x16x16xf32>
    %45 = vector.shape_cast %44 : vector<1x16x16xf32> to vector<16x16xf32>
    %cst_29 = arith.constant dense<0.000000e+00> : vector<8x16xf32>
    %46 = tpu.matmul %43, %45, %cst_29 {dimension_numbers = #tpu.dot_dimension_numbers<[1], [1], [0], [0], [0, 0, 1, 0], [], []>} : vector<8x16xf32>, vector<16x16xf32>, vector<8x16xf32> -> vector<8x16xf32>
    %cst_30 = arith.constant dense<0xFF800000> : vector<8xf32>
    %47 = vector.multi_reduction <maximumf>, %46, %cst_30 [1] : vector<8x16xf32> to vector<8xf32>
    %48 = vector.shape_cast %47 : vector<8xf32> to vector<8x1xf32>
    %49 = vector.broadcast %48 : vector<8x1xf32> to vector<8x16xf32>
    %50 = arith.subf %46, %49 : vector<8x16xf32>
    %51 = math.exp %50 : vector<8x16xf32>
    %cst_31 = arith.constant dense<0.000000e+00> : vector<8xf32>
    %52 = vector.multi_reduction <add>, %51, %cst_31 [1] : vector<8x16xf32> to vector<8xf32>
    %53 = vector.shape_cast %52 : vector<8xf32> to vector<8x1xf32>
    %54 = tpu.reciprocal %53 {approx = true} : vector<8x1xf32> -> vector<8x1xf32>
    %55 = vector.broadcast %54 : vector<8x1xf32> to vector<8x16xf32>
    %56 = arith.mulf %51, %55 : vector<8x16xf32>
    %c2_32 = arith.constant 2 : index
    %c0_33 = arith.constant 0 : index
    %c0_34 = arith.constant 0 : index
    %57 = vector.load %arg10[%c2_32, %c0_33, %c0_34] : memref<4x16x16xf32, #tpu.memory_space<vmem>>, vector<1x16x16xf32>
    %58 = vector.shape_cast %57 : vector<1x16x16xf32> to vector<16x16xf32>
    %cst_35 = arith.constant dense<0.000000e+00> : vector<8x16xf32>
    %59 = tpu.matmul %56, %58, %cst_35 {dimension_numbers = #tpu.dot_dimension_numbers<[1], [0], [0], [1], [0, 0, 1, 1], [], []>} : vector<8x16xf32>, vector<16x16xf32>, vector<8x16xf32> -> vector<8x16xf32>
    %c0_36 = arith.constant 0 : index
    %c32 = arith.constant 32 : index
    %60 = vector.load %arg11[%c0_36, %c32] : memref<8x64xf32, #tpu.memory_space<vmem>>, vector<8x16xf32>
    tpu.vector_store %arg11[%c0_36, %c32], %59 {strides = array<i32>} : memref<8x64xf32, #tpu.memory_space<vmem>>, vector<8x16xf32>,
    %61 = vector.extract_strided_slice %6 {offsets = [0, 48], sizes = [8, 16], strides = [1, 1]} : vector<8x64xf32> to vector<8x16xf32>
    %c3 = arith.constant 3 : index
    %c0_37 = arith.constant 0 : index
    %c0_38 = arith.constant 0 : index
    %62 = vector.load %arg9[%c3, %c0_37, %c0_38] : memref<4x16x16xf32, #tpu.memory_space<vmem>>, vector<1x16x16xf32>
    %63 = vector.shape_cast %62 : vector<1x16x16xf32> to vector<16x16xf32>
    %cst_39 = arith.constant dense<0.000000e+00> : vector<8x16xf32>
    %64 = tpu.matmul %61, %63, %cst_39 {dimension_numbers = #tpu.dot_dimension_numbers<[1], [1], [0], [0], [0, 0, 1, 0], [], []>} : vector<8x16xf32>, vector<16x16xf32>, vector<8x16xf32> -> vector<8x16xf32>
    %cst_40 = arith.constant dense<0xFF800000> : vector<8xf32>
    %65 = vector.multi_reduction <maximumf>, %64, %cst_40 [1] : vector<8x16xf32> to vector<8xf32>
    %66 = vector.shape_cast %65 : vector<8xf32> to vector<8x1xf32>
    %67 = vector.broadcast %66 : vector<8x1xf32> to vector<8x16xf32>
    %68 = arith.subf %64, %67 : vector<8x16xf32>
    %69 = math.exp %68 : vector<8x16xf32>
    %cst_41 = arith.constant dense<0.000000e+00> : vector<8xf32>
    %70 = vector.multi_reduction <add>, %69, %cst_41 [1] : vector<8x16xf32> to vector<8xf32>
    %71 = vector.shape_cast %70 : vector<8xf32> to vector<8x1xf32>
    %72 = tpu.reciprocal %71 {approx = true} : vector<8x1xf32> -> vector<8x1xf32>
    %73 = vector.broadcast %72 : vector<8x1xf32> to vector<8x16xf32>
    %74 = arith.mulf %69, %73 : vector<8x16xf32>
    %c3_42 = arith.constant 3 : index
    %c0_43 = arith.constant 0 : index
    %c0_44 = arith.constant 0 : index
    %75 = vector.load %arg10[%c3_42, %c0_43, %c0_44] : memref<4x16x16xf32, #tpu.memory_space<vmem>>, vector<1x16x16xf32>
    %76 = vector.shape_cast %75 : vector<1x16x16xf32> to vector<16x16xf32>
    %cst_45 = arith.constant dense<0.000000e+00> : vector<8x16xf32>
    %77 = tpu.matmul %74, %76, %cst_45 {dimension_numbers = #tpu.dot_dimension_numbers<[1], [0], [0], [1], [0, 0, 1, 1], [], []>} : vector<8x16xf32>, vector<16x16xf32>, vector<8x16xf32> -> vector<8x16xf32>
    %c0_46 = arith.constant 0 : index
    %c48 = arith.constant 48 : index
    %78 = vector.load %arg11[%c0_46, %c48] : memref<8x64xf32, #tpu.memory_space<vmem>>, vector<8x16xf32>
    tpu.vector_store %arg11[%c0_46, %c48], %77 {strides = array<i32>} : memref<8x64xf32, #tpu.memory_space<vmem>>, vector<8x16xf32>,
    %c0_47 = arith.constant 0 : index
    %c0_48 = arith.constant 0 : index
    %79 = vector.load %arg11[%c0_47, %c0_48] : memref<8x64xf32, #tpu.memory_space<vmem>>, vector<8x64xf32>
    %c0_49 = arith.constant 0 : index
    %c0_50 = arith.constant 0 : index
    %80 = vector.load %arg6[%c0_49, %c0_50] : memref<64x32xf32, #tpu.memory_space<vmem>>, vector<64x32xf32>
    %cst_51 = arith.constant dense<0.000000e+00> : vector<8x32xf32>
    %81 = tpu.matmul %79, %80, %cst_51 {dimension_numbers = #tpu.dot_dimension_numbers<[1], [0], [0], [1], [0, 0, 1, 1], [], []>} : vector<8x64xf32>, vector<64x32xf32>, vector<8x32xf32> -> vector<8x32xf32>
    %c0_52 = arith.constant 0 : index
    %c0_53 = arith.constant 0 : index
    %82 = vector.load %arg7[%c0_52, %c0_53] : memref<1x32xf32, #tpu.memory_space<vmem>>, vector<1x32xf32>
    %83 = vector.broadcast %82 : vector<1x32xf32> to vector<8x32xf32>
    %84 = arith.addf %81, %83 : vector<8x32xf32>
    %c0_54 = arith.constant 0 : index
    %c0_55 = arith.constant 0 : index
    %c0_56 = arith.constant 0 : index
    %85 = vector.load %arg8[%c0_54, %c0_55, %c0_56] : memref<1x8x32xf32, #tpu.memory_space<vmem>>, vector<1x8x32xf32>
    %86 = vector.shape_cast %85 : vector<1x8x32xf32> to vector<8x32xf32>
    %87 = vector.shape_cast %84 : vector<8x32xf32> to vector<1x8x32xf32>
    tpu.vector_store %arg8[%c0_54, %c0_55, %c0_56], %87 {strides = array<i32>} : memref<1x8x32xf32, #tpu.memory_space<vmem>>, vector<1x8x32xf32>,
    return
  }
  func.func @transform_0(%arg0: i32, %arg1: i32) -> (i32, i32, i32) {
    %c0_i32 = arith.constant 0 : i32
    %c0_i32_0 = arith.constant 0 : i32
    return %arg0, %arg1, %c0_i32 : i32, i32, i32
  }
  func.func @transform_1(%arg0: i32, %arg1: i32) -> (i32, i32, i32) {
    %c0_i32 = arith.constant 0 : i32
    %c0_i32_0 = arith.constant 0 : i32
    %c0_i32_1 = arith.constant 0 : i32
    return %arg0, %c0_i32, %c0_i32_0 : i32, i32, i32
  }
  func.func @transform_2(%arg0: i32, %arg1: i32) -> (i32, i32) {
    %c0_i32 = arith.constant 0 : i32
    %c0_i32_0 = arith.constant 0 : i32
    %c0_i32_1 = arith.constant 0 : i32
    return %c0_i32, %c0_i32_0 : i32, i32
  }
  func.func @transform_3(%arg0: i32, %arg1: i32) -> (i32, i32) {
    %c0_i32 = arith.constant 0 : i32
    %c0_i32_0 = arith.constant 0 : i32
    %c0_i32_1 = arith.constant 0 : i32
    return %c0_i32, %c0_i32_0 : i32, i32
  }
  func.func @transform_4(%arg0: i32, %arg1: i32) -> (i32, i32) {
    %c0_i32 = arith.constant 0 : i32
    %c0_i32_0 = arith.constant 0 : i32
    %c0_i32_1 = arith.constant 0 : i32
    return %c0_i32, %c0_i32_0 : i32, i32
  }
  func.func @transform_5(%arg0: i32, %arg1: i32) -> (i32, i32) {
    %c0_i32 = arith.constant 0 : i32
    %c0_i32_0 = arith.constant 0 : i32
    %c0_i32_1 = arith.constant 0 : i32
    return %c0_i32, %c0_i32_0 : i32, i32
  }
  func.func @transform_6(%arg0: i32, %arg1: i32) -> (i32, i32, i32) {
    %c0_i32 = arith.constant 0 : i32
    %c0_i32_0 = arith.constant 0 : i32
    return %arg0, %arg1, %c0_i32 : i32, i32, i32
  }
}

</mosaic_0001>

<llo_original>
// kernel: tpu_custom_call.1
$region0: #{tpu_custom_call.1}
  #allocation0 [shape = 'u32[]', space=smem, size = 0x4, offset = 0x4, fixed_abs, tag = 'smem constant byte address 0x4 - core index']
  #allocation1 [shape = 'u32[144,128]{1,0:T(1,128)}', space=vmem, size = 0x12000, scoped, tag = 'internal scratch']
  #allocation2 [shape = 'f32[4,16,16]{2,1,0:T(8,128)}', space=vmem, size = 0x8000, scoped, tag = 'scratch operand']
  #allocation3 [shape = 'f32[4,16,16]{2,1,0:T(8,128)}', space=vmem, size = 0x8000, scoped, tag = 'scratch operand']
  #allocation4 [shape = 'f32[8,64]{1,0:T(8,128)}', space=vmem, size = 0x1000, scoped, tag = 'scratch operand']
  %s0 = inlined_call_operand.vmem [shape: f32[2,16,32], index: 0, kind: input, shape index: {}]
  %s1 = inlined_call_operand.vmem [shape: f32[2,16,32], index: 1, kind: input, shape index: {}]
  %s2 = inlined_call_operand.vmem [shape: f32[32,64], index: 2, kind: input, shape index: {}]
  %s3 = inlined_call_operand.hbm [shape: f32[32,128], index: 3, kind: input, shape index: {}]
  %s4 = inlined_call_operand.vmem [shape: f32[64,32], index: 4, kind: input, shape index: {}]
  %s5 = inlined_call_operand.vmem [shape: f32[1,32], index: 5, kind: input, shape index: {}]
  %s6 = inlined_call_operand.hbm [shape: f32[2,16,32], index: 6, kind: output, shape index: {}]
  %s7 = sld [smem:[#allocation0]]
  $region65: #{tpu_custom_call.1} parent=0
    _
  %s9 = ssub.s32 1, %s7
  %s10 = scalar_select 0, %s9, %s7
  $region1: #{tpu_custom_call.1} parent=0
    #allocation5 [shape = 'u8[16384]{0}', space=vmem, size = 0x4000, scoped, tag = 'input window, operand 3, single buffered']
    #allocation6 [shape = 's32[2]{0}', space=sflag, size = 0x8, scoped, tag = 'scoped memory for tpu_custom_call.1']
    #allocation7 [shape = 's32[2]{0}', space=sflag, size = 0x8, scoped, tag = 'scoped memory for tpu_custom_call.1']
    #allocation8 [shape = 'u8[8192]{0}', space=vmem, size = 0x2000, scoped, tag = 'output window, operand 0']
    %11 = vsyncpa [#allocation6], 0
    %12 = vsyncpa [#allocation7], 0
    %s13 = scalar_lea.sflag [#allocation7], 1
    %14 = vsyncpa %s13, 0
    loop: start=0, step=1, limit=6
    $region2: #{tpu_custom_call.1} parent=1 // loop_pre_header
      _
    $region3: #{tpu_custom_call.1} parent=1 // loop_header
      %s16 = sphi 0, %s20
      %p17 = scmp.ge.s32.totalorder %s16, 6
      %s23 = sphi 0, %s35
      %s24 = sphi 0, %s31
      %s25 = sphi 0, %s23
      %s26 = sphi 0, %s24
      %s27 = sphi 0, %s25
      %s28 = sphi 0, %s26
      %s40 = sphi 0, %s42
      %s43 = sphi 0, %s40
      %s44 = sphi 0, %s43
      %s60 = sphi 0, %s44
      %s66 = sphi 0, %s68
      %s69 = sphi 0, %s66
      %s70 = sphi 0, %s69
      %s86 = sphi 0, %s70
      %s90 = sphi 0, %s90
      %s92 = sphi 0, %s90
      %s93 = sphi 0, %s92
      %s107 = sphi 0, %s93
      %s111 = sphi 0, %s111
      %s113 = sphi 0, %s111
      %s114 = sphi 0, %s113
      %s128 = sphi 0, %s114
      %s132 = sphi 0, %s132
      %s134 = sphi 0, %s132
      %s135 = sphi 0, %s134
      %s149 = sphi 0, %s135
      %s153 = sphi 0, %s153
      %s155 = sphi 0, %s153
      %s156 = sphi 0, %s155
      %s170 = sphi 0, %s156
      %s178 = sphi 0, %s180
      %s181 = sphi 0, %s178
      %s182 = sphi 0, %s181
      %s198 = sphi 0, %s182
    $region4: #{tpu_custom_call.1} parent=1 // loop_header_branch
      %19 = sbr.rel (%p17) target = $region8
    $region5: #{tpu_custom_call.1} parent=1 // loop_body
      %s21 = ssub.s32 %s16, 1
      %s22 = ssub.s32 %s16, 2
      %s29 = sadd.s32 1, %s24
      %p30 = scmp.ge.s32.totalorder %s29, 2
      %s31 = scalar_select %p30, 0, %s29
      %s32 = sadd.s32 1, %s23
      %s33 = scalar_select %p30, %s32, %s23
      %p34 = scmp.ge.s32.totalorder %s33, 2
      %s35 = scalar_select %p34, 0, %s33
      %s36 = ssub.s32 %s23, %s35
      %s37 = ssub.s32 %s24, %s31
      %s38 = sor.u32 %s36, %s37
      %p39 = scmp.eq.s32.totalorder %s38, 0
      %s41 = sadd.s32 %s40, 1
      %s42 = scalar_select %p39, %s40, %s41
      %p45 = pneg %p39
      %p46 = scmp.eq.s32.totalorder %s16, 3
      %p47 = por %p45, %p46
      %p48 = scmp.ne.s32.totalorder %s40, %s43
      %p49 = scmp.eq.s32.totalorder %s16, 0
      %p50 = por %p48, %p49
      %p51 = scmp.ne.s32.totalorder %s40, %s43
      %p52 = scmp.eq.s32.totalorder %s21, 3
      %p53 = por %p51, %p52
      %p54 = scmp.ne.s32.totalorder %s43, %s44
      %p55 = scmp.eq.s32.totalorder %s21, 0
      %p56 = por %p54, %p55
      %p57 = scmp.ne.s32.totalorder %s43, %s44
      %p58 = scmp.eq.s32.totalorder %s22, 3
      %p59 = por %p57, %p58
      %p61 = scmp.ne.s32.totalorder %s44, %s60
      %p62 = scmp.eq.s32.totalorder %s22, 0
      %p63 = por %p61, %p62
      %s64 = ssub.s32 %s23, %s35
      %p65 = scmp.eq.s32.totalorder %s64, 0
      %s67 = sadd.s32 %s66, 1
      %s68 = scalar_select %p65, %s66, %s67
      %p71 = pneg %p65
      %p72 = scmp.eq.s32.totalorder %s16, 3
      %p73 = por %p71, %p72
      %p74 = scmp.ne.s32.totalorder %s66, %s69
      %p75 = scmp.eq.s32.totalorder %s16, 0
      %p76 = por %p74, %p75
      %p77 = scmp.ne.s32.totalorder %s66, %s69
      %p78 = scmp.eq.s32.totalorder %s21, 3
      %p79 = por %p77, %p78
      %p80 = scmp.ne.s32.totalorder %s69, %s70
      %p81 = scmp.eq.s32.totalorder %s21, 0
      %p82 = por %p80, %p81
      %p83 = scmp.ne.s32.totalorder %s69, %s70
      %p84 = scmp.eq.s32.totalorder %s22, 3
      %p85 = por %p83, %p84
      %p87 = scmp.ne.s32.totalorder %s70, %s86
      %p88 = scmp.eq.s32.totalorder %s22, 0
      %p89 = por %p87, %p88
      %s91 = sadd.s32 %s90, 1
      %p94 = scmp.eq.s32.totalorder %s16, 3
      %p95 = scmp.ne.s32.totalorder %s90, %s92
      %p96 = scmp.eq.s32.totalorder %s16, 0
      %p97 = por %p95, %p96
      %p98 = scmp.ne.s32.totalorder %s90, %s92
      %p99 = scmp.eq.s32.totalorder %s21, 3
      %p100 = por %p98, %p99
      %p101 = scmp.ne.s32.totalorder %s92, %s93
      %p102 = scmp.eq.s32.totalorder %s21, 0
      %p103 = por %p101, %p102
      %p104 = scmp.ne.s32.totalorder %s92, %s93
      %p105 = scmp.eq.s32.totalorder %s22, 3
      %p106 = por %p104, %p105
      %p108 = scmp.ne.s32.totalorder %s93, %s107
      %p109 = scmp.eq.s32.totalorder %s22, 0
      %p110 = por %p108, %p109
      %s112 = sadd.s32 %s111, 1
      %p115 = scmp.eq.s32.totalorder %s16, 3
      %p116 = scmp.ne.s32.totalorder %s111, %s113
      %p117 = scmp.eq.s32.totalorder %s16, 0
      %p118 = por %p116, %p117
      %p119 = scmp.ne.s32.totalorder %s111, %s113
      %p120 = scmp.eq.s32.totalorder %s21, 3
      %p121 = por %p119, %p120
      %p122 = scmp.ne.s32.totalorder %s113, %s114
      %p123 = scmp.eq.s32.totalorder %s21, 0
      %p124 = por %p122, %p123
      %p125 = scmp.ne.s32.totalorder %s113, %s114
      %p126 = scmp.eq.s32.totalorder %s22, 3
      %p127 = por %p125, %p126
      %p129 = scmp.ne.s32.totalorder %s114, %s128
      %p130 = scmp.eq.s32.totalorder %s22, 0
      %p131 = por %p129, %p130
      %s133 = sadd.s32 %s132, 1
      %p136 = scmp.eq.s32.totalorder %s16, 3
      %p137 = scmp.ne.s32.totalorder %s132, %s134
      %p138 = scmp.eq.s32.totalorder %s16, 0
      %p139 = por %p137, %p138
      %p140 = scmp.ne.s32.totalorder %s132, %s134
      %p141 = scmp.eq.s32.totalorder %s21, 3
      %p142 = por %p140, %p141
      %p143 = scmp.ne.s32.totalorder %s134, %s135
      %p144 = scmp.eq.s32.totalorder %s21, 0
      %p145 = por %p143, %p144
      %p146 = scmp.ne.s32.totalorder %s134, %s135
      %p147 = scmp.eq.s32.totalorder %s22, 3
      %p148 = por %p146, %p147
      %p150 = scmp.ne.s32.totalorder %s135, %s149
      %p151 = scmp.eq.s32.totalorder %s22, 0
      %p152 = por %p150, %p151
      %s154 = sadd.s32 %s153, 1
      %p157 = scmp.eq.s32.totalorder %s16, 3
      %p158 = scmp.ne.s32.totalorder %s153, %s155
      %p159 = scmp.eq.s32.totalorder %s16, 0
      %p160 = por %p158, %p159
      %p161 = scmp.ne.s32.totalorder %s153, %s155
      %p162 = scmp.eq.s32.totalorder %s21, 3
      %p163 = por %p161, %p162
      %p164 = scmp.ne.s32.totalorder %s155, %s156
      %p165 = scmp.eq.s32.totalorder %s21, 0
      %p166 = por %p164, %p165
      %p167 = scmp.ne.s32.totalorder %s155, %s156
      %p168 = scmp.eq.s32.totalorder %s22, 3
      %p169 = por %p167, %p168
      %p171 = scmp.ne.s32.totalorder %s156, %s170
      %p172 = scmp.eq.s32.totalorder %s22, 0
      %p173 = por %p171, %p172
      %s174 = ssub.s32 %s23, %s35
      %s175 = ssub.s32 %s24, %s31
      %s176 = sor.u32 %s174, %s175
      %p177 = scmp.eq.s32.totalorder %s176, 0
      %s179 = sadd.s32 %s178, 1
      %s180 = scalar_select %p177, %s178, %s179
      %p183 = pneg %p177
      %p184 = scmp.eq.s32.totalorder %s16, 3
      %p185 = por %p183, %p184
      %p186 = scmp.ne.s32.totalorder %s178, %s181
      %p187 = scmp.eq.s32.totalorder %s16, 0
      %p188 = por %p186, %p187
      %p189 = scmp.ne.s32.totalorder %s178, %s181
      %p190 = scmp.eq.s32.totalorder %s21, 3
      %p191 = por %p189, %p190
      %p192 = scmp.ne.s32.totalorder %s181, %s182
      %p193 = scmp.eq.s32.totalorder %s21, 0
      %p194 = por %p192, %p193
      %p195 = scmp.ne.s32.totalorder %s181, %s182
      %p196 = scmp.eq.s32.totalorder %s22, 3
      %p197 = por %p195, %p196
      %p199 = scmp.ne.s32.totalorder %s182, %s198
      %p200 = scmp.eq.s32.totalorder %s22, 0
      %p201 = por %p199, %p200
      %p202 = scmp.le.s32.totalorder 1, %s16
      %p203 = scmp.lt.s32.totalorder %s16, 5
      %p204 = pnand %p202, %p203
      %p205 = pneg %p204
      // Predicated region
      $region9: #{tpu_custom_call.1} parent=5 // pred_check
        _
      $region10: #{tpu_custom_call.1} parent=5 // pred_check_branch
        %207 = sbr.rel (%p204) target = $region12
      $region11: #{tpu_custom_call.1} parent=5 // pred_region
        %s208 = ssub.s32 %s16, 1
        // Predicated region
        $region13: #{tpu_custom_call.1} parent=11 // pred_check
          %p209 = pneg %p103
        $region14: #{tpu_custom_call.1} parent=11 // pred_check_branch
          %211 = sbr.rel (%p209) target = $region16
        $region15: #{tpu_custom_call.1} parent=11 // pred_region
          _
        $region16: #{tpu_custom_call.1} parent=11 // pred_fallthru
          _
        // Predicated region
        $region17: #{tpu_custom_call.1} parent=11 // pred_check
          %p212 = pneg %p124
        $region18: #{tpu_custom_call.1} parent=11 // pred_check_branch
          %214 = sbr.rel (%p212) target = $region20
        $region19: #{tpu_custom_call.1} parent=11 // pred_region
          %s216 = ssub.s32 512, 512
          %217 = vsyncadd [#allocation6], %s216
          %s218 = sshll.u32 [#allocation5], 4
          %s219 = int_to_ptr.vmem [resolvable:$true] %s218
          %224 = dma.hbm_to_vmem [thread:$0]  %s3, 512, %s219, [#allocation6], 128, 128, 8
        $region20: #{tpu_custom_call.1} parent=11 // pred_fallthru
          _
        // Predicated region
        $region21: #{tpu_custom_call.1} parent=11 // pred_check
          %p225 = pneg %p145
        $region22: #{tpu_custom_call.1} parent=11 // pred_check_branch
          %227 = sbr.rel (%p225) target = $region24
        $region23: #{tpu_custom_call.1} parent=11 // pred_region
          _
        $region24: #{tpu_custom_call.1} parent=11 // pred_fallthru
          _
        // Predicated region
        $region25: #{tpu_custom_call.1} parent=11 // pred_check
          %p228 = pneg %p166
        $region26: #{tpu_custom_call.1} parent=11 // pred_check_branch
          %230 = sbr.rel (%p228) target = $region28
        $region27: #{tpu_custom_call.1} parent=11 // pred_region
          _
        $region28: #{tpu_custom_call.1} parent=11 // pred_fallthru
          _
      $region12: #{tpu_custom_call.1} parent=5 // pred_fallthru
        _
      %p231 = scmp.lt.s32.totalorder %s16, 4
      // Predicated region
      $region29: #{tpu_custom_call.1} parent=5 // pred_check
        %p232 = pneg %p231
      $region30: #{tpu_custom_call.1} parent=5 // pred_check_branch
        %234 = sbr.rel (%p232) target = $region32
      $region31: #{tpu_custom_call.1} parent=5 // pred_region
        // Predicated region
        $region33: #{tpu_custom_call.1} parent=31 // pred_check
          %p235 = pneg %p50
        $region34: #{tpu_custom_call.1} parent=31 // pred_check_branch
          %237 = sbr.rel (%p235) target = $region36
        $region35: #{tpu_custom_call.1} parent=31 // pred_region
          %p238 = scmp.lt.s32.totalorder %s23, 1
          %s239 = scalar_select %p238, %s23, 1
          %p240 = scmp.lt.s32.totalorder %s24, 1
          %s241 = scalar_select %p240, %s24, 1
          %s242 = smul.addr %s239, 2
          %s243 = sadd.s32 %s241, %s242
          %s244 = smul.addr %s243, 8
          %s245 = scalar_lea.vmem %s0, %s244
        $region36: #{tpu_custom_call.1} parent=31 // pred_fallthru
          _
        // Predicated region
        $region37: #{tpu_custom_call.1} parent=31 // pred_check
          %p246 = pneg %p76
        $region38: #{tpu_custom_call.1} parent=31 // pred_check_branch
          %248 = sbr.rel (%p246) target = $region40
        $region39: #{tpu_custom_call.1} parent=31 // pred_region
          %p249 = scmp.lt.s32.totalorder %s23, 1
          %s250 = scalar_select %p249, %s23, 1
          %s251 = smul.addr %s250, 2
          %s252 = smul.addr %s251, 8
          %s253 = scalar_lea.vmem %s1, %s252
        $region40: #{tpu_custom_call.1} parent=31 // pred_fallthru
          _
      $region32: #{tpu_custom_call.1} parent=5 // pred_fallthru
        _
      %p254 = scmp.le.s32.totalorder 1, %s16
      %p255 = scmp.lt.s32.totalorder %s16, 5
      %p256 = pnand %p254, %p255
      %p257 = pneg %p256
      // Predicated region
      $region41: #{tpu_custom_call.1} parent=5 // pred_check
        _
      $region42: #{tpu_custom_call.1} parent=5 // pred_check_branch
        %259 = sbr.rel (%p256) target = $region44
      $region43: #{tpu_custom_call.1} parent=5 // pred_region
        %s260 = ssub.s32 %s16, 1
        // Predicated region
        $region45: #{tpu_custom_call.1} parent=43 // pred_check
          %p261 = pneg %p124
        $region46: #{tpu_custom_call.1} parent=43 // pred_check_branch
          %263 = sbr.rel (%p261) target = $region48
        $region47: #{tpu_custom_call.1} parent=43 // pred_region
          %264 = dma.done [#allocation6], 512
        $region48: #{tpu_custom_call.1} parent=43 // pred_fallthru
          _
        %p265 = scmp.lt.s32.totalorder %s25, 1
        %s266 = scalar_select %p265, %s25, 1
        %p267 = scmp.lt.s32.totalorder %s26, 1
        %s268 = scalar_select %p267, %s26, 1
        %s269 = smul.addr %s266, 2
        %s270 = sadd.s32 %s268, %s269
        %s271 = smul.addr %s270, 8
        %s272 = scalar_lea.vmem %s0, %s271
        %p273 = pneg %p56
        %p274 = pneg %p53
        %p275 = scmp.lt.s32.totalorder %s25, 1
        %s276 = scalar_select %p275, %s25, 1
        %s277 = smul.addr %s276, 2
        %s278 = smul.addr %s277, 8
        %s279 = scalar_lea.vmem %s1, %s278
        %p280 = pneg %p82
        %p281 = pneg %p79
        %p282 = pneg %p103
        %p283 = pneg %p100
        %p284 = pneg %p124
        %p285 = pneg %p121
        %p286 = pneg %p145
        %p287 = pneg %p142
        %p288 = pneg %p166
        %p289 = pneg %p163
        %p290 = pneg %p194
        %p291 = pneg %p191
        %s292 = sand.u32 %s181, 1
        %s293 = scalar_lea.sflag [#allocation7], %s292
        %s294 = sand.u32 %s181, 1
        %s295 = smul.addr %s294, 8
        %s296 = scalar_lea.vmem [#allocation8], %s295
        %p297 = scmp.lt.s32.totalorder %s25, 1
        %s298 = scalar_select %p297, %s25, 1
        %p299 = scmp.lt.s32.totalorder %s26, 1
        %s300 = scalar_select %p299, %s26, 1
        %s301 = smul.addr %s298, 2
        %s302 = sadd.s32 %s300, %s301
        %s303 = smul.addr %s302, 8
        %s304 = scalar_lea.vmem %s0, %s303
        %p305 = scmp.lt.s32.totalorder %s25, 1
        %s306 = scalar_select %p305, %s25, 1
        %s307 = smul.addr %s306, 2
        %s308 = smul.addr %s307, 8
        %s309 = scalar_lea.vmem %s1, %s308
        %p310 = scmp.eq.s32.totalorder %s26, 0
        // Predicated region
        $region49: #{tpu_custom_call.1} parent=43 // pred_check
          %p311 = pneg %p310
        $region50: #{tpu_custom_call.1} parent=43 // pred_check_branch
          %313 = sbr.rel (%p311) target = $region52
        $region51: #{tpu_custom_call.1} parent=43 // pred_region
          %v314 = vld [vmem:[%s309] sm:$0xff]
          %v315 = vld [vmem:[%s309 + $0x8] sm:$0xff]
          %v316 = vld [vmem:[#allocation5] sm:$0xff]
          %v317 = vld [vmem:[#allocation5 + $0x8] sm:$0xff]
          %v318 = vld [vmem:[#allocation5 + $0x10] sm:$0xff]
          %v319 = vld [vmem:[#allocation5 + $0x18] sm:$0xff]
          %vm320 = vcmask 261120
          %v322 = vsel %vm320, %v314, 0
          %v325 = vsel %vm320, %v315, 0
          %327 = vmatprep.subr.mxu0 0.0
          %328 = vmatpush1.msra.mxu0 %v316
          %329 = vmatprep.subr.mxu0 0.0
          %330 = vmatpush1.msra.mxu0 %v317
          %331 = vmatprep.subr.mxu0 0.0
          %332 = vmatpush1.msra.mxu0 %v318
          %333 = vmatprep.subr.mxu0 0.0
          %334 = vmatpush1.msra.mxu0 %v319
          %335 = vmatprep.subr.mxu0 0.0
          %336 = vmatpush1.msra.mxu0 0.0
          %337 = vmatprep.subr.mxu0 0.0
          %338 = vmatpush1.msra.mxu0 0.0
          %339 = vmatprep.subr.mxu0 0.0
          %340 = vmatpush1.msra.mxu0 0.0
          %341 = vmatprep.subr.mxu0 0.0
          %342 = vmatpush1.msra.mxu0 0.0
          %343 = vmatprep.subr.mxu0 0.0
          %344 = vmatpush1.msra.mxu0 0.0
          %345 = vmatprep.subr.mxu0 0.0
          %346 = vmatpush1.msra.mxu0 0.0
          %347 = vmatprep.subr.mxu0 0.0
          %348 = vmatpush1.msra.mxu0 0.0
          %349 = vmatprep.subr.mxu0 0.0
          %350 = vmatpush1.msra.mxu0 0.0
          %351 = vmatprep.subr.mxu0 0.0
          %352 = vmatpush1.msra.mxu0 0.0
          %353 = vmatprep.subr.mxu0 0.0
          %354 = vmatpush1.msra.mxu0 0.0
          %355 = vmatprep.subr.mxu0 0.0
          %356 = vmatpush1.msra.mxu0 0.0
          %357 = vmatprep.subr.mxu0 0.0
          %358 = vmatpush1.msra.mxu0 0.0
          %359 = vmatprep.subr.mxu0 0.0
          %360 = vmatpush1.msra.mxu0 0.0
          %361 = vmatprep.subr.mxu0 0.0
          %362 = vmatpush1.msra.mxu0 0.0
          %363 = vmatprep.subr.mxu0 0.0
          %364 = vmatpush1.msra.mxu0 0.0
          %365 = vmatprep.subr.mxu0 0.0
          %366 = vmatpush1.msra.mxu0 0.0
          %367 = vmatprep.subr.mxu0 0.0
          %368 = vmatpush1.msra.mxu0 0.0
          %369 = vmatprep.subr.mxu0 0.0
          %370 = vmatpush1.msra.mxu0 0.0
          %371 = vmatprep.subr.mxu0 0.0
          %372 = vmatpush1.msra.mxu0 0.0
          %373 = vmatprep.subr.mxu0 0.0
          %374 = vmatpush1.msra.mxu0 0.0
          %375 = vmatprep.subr.mxu0 0.0
          %376 = vmatpush1.msra.mxu0 0.0
          %377 = vmatprep.subr.mxu0 0.0
          %378 = vmatpush1.msra.mxu0 0.0
          %379 = vmatprep.subr.mxu0 0.0
          %380 = vmatpush1.msra.mxu0 0.0
          %381 = vmatprep.subr.mxu0 0.0
          %382 = vmatpush1.msra.mxu0 0.0
          %383 = vmatprep.subr.mxu0 0.0
          %384 = vmatpush1.msra.mxu0 0.0
          %385 = vmatprep.subr.mxu0 0.0
          %386 = vmatpush1.msra.mxu0 0.0
          %387 = vmatprep.subr.mxu0 0.0
          %388 = vmatpush1.msra.mxu0 0.0
          %389 = vmatprep.subr.mxu0 0.0
          %390 = vmatpush1.msra.mxu0 0.0
          %391 = vmatprep.mubr.f32.mxu0 0.0
          %392 = vmatmul.mubr.f32.gmra.mrb[0].mxu0 %v322
          %v393 = vpop.f32.mrb[0].mxu0
          %v394 = vadd.f32 0.0, %v393
          %v395 = vpop.f32.mrb[0].mxu0
          %396 = vmatprep.mubr.f32.mxu0 0.0
          %397 = vmatmul.mubr.f32.gmra.mrb[0].mxu0 %v325
          %v398 = vpop.f32.mrb[0].mxu0
          %v399 = vadd.f32 0.0, %v398
          %v400 = vpop.f32.mrb[0].mxu0
          %401 = vdwg.mxu0
          %vm402 = vcmask 130048
          %403 = vst.msk [vmem:[#allocation2] sm:$0xff] %vm402, %v394
          %404 = vst.msk [vmem:[#allocation2 + $0x8] sm:$0xff] %vm402, %v399
          %407 = vrot.lane.b32.xlu0 %v394, 64
          %v408 = vpop.permute.xlu0 %407
          %409 = vrot.lane.b32.xlu0 %v399, 64
          %v410 = vpop.permute.xlu0 %409
          %413 = vst.msk [vmem:[#allocation3] sm:$0xff] %vm402, %v408
          %414 = vst.msk [vmem:[#allocation3 + $0x8] sm:$0xff] %vm402, %v410
          %415 = vrot.lane.b32.xlu0 %v394, 112
          %v416 = vpop.permute.xlu0 %415
          %417 = vrot.lane.b32.xlu0 %v399, 112
          %v418 = vpop.permute.xlu0 %417
          %s421 = scalar_lea.vmem [#allocation2], 16
          %422 = vst.msk [vmem:[%s421] sm:$0xff] %vm402, %v416
          %423 = vst.msk [vmem:[%s421 + $0x8] sm:$0xff] %vm402, %v418
          %424 = vrot.lane.b32.xlu0 %v394, 48
          %v425 = vpop.permute.xlu0 %424
          %426 = vrot.lane.b32.xlu0 %v399, 48
          %v427 = vpop.permute.xlu0 %426
          %s430 = scalar_lea.vmem [#allocation3], 16
          %431 = vst.msk [vmem:[%s430] sm:$0xff] %vm402, %v425
          %432 = vst.msk [vmem:[%s430 + $0x8] sm:$0xff] %vm402, %v427
          %433 = vrot.lane.b32.xlu0 %v394, 96
          %v434 = vpop.permute.xlu0 %433
          %435 = vrot.lane.b32.xlu0 %v399, 96
          %v436 = vpop.permute.xlu0 %435
          %s439 = scalar_lea.vmem [#allocation2], 32
          %440 = vst.msk [vmem:[%s439] sm:$0xff] %vm402, %v434
          %441 = vst.msk [vmem:[%s439 + $0x8] sm:$0xff] %vm402, %v436
          %442 = vrot.lane.b32.xlu0 %v394, 32
          %v443 = vpop.permute.xlu0 %442
          %444 = vrot.lane.b32.xlu0 %v399, 32
          %v445 = vpop.permute.xlu0 %444
          %s448 = scalar_lea.vmem [#allocation3], 32
          %449 = vst.msk [vmem:[%s448] sm:$0xff] %vm402, %v443
          %450 = vst.msk [vmem:[%s448 + $0x8] sm:$0xff] %vm402, %v445
          %451 = vrot.lane.b32.xlu0 %v394, 80
          %v452 = vpop.permute.xlu0 %451
          %453 = vrot.lane.b32.xlu0 %v399, 80
          %v454 = vpop.permute.xlu0 %453
          %s457 = scalar_lea.vmem [#allocation2], 48
          %458 = vst.msk [vmem:[%s457] sm:$0xff] %vm402, %v452
          %459 = vst.msk [vmem:[%s457 + $0x8] sm:$0xff] %vm402, %v454
          %460 = vrot.lane.b32.xlu0 %v394, 16
          %v461 = vpop.permute.xlu0 %460
          %462 = vrot.lane.b32.xlu0 %v399, 16
          %v463 = vpop.permute.xlu0 %462
          %s466 = scalar_lea.vmem [#allocation3], 48
          %467 = vst.msk [vmem:[%s466] sm:$0xff] %vm402, %v461
          %468 = vst.msk [vmem:[%s466 + $0x8] sm:$0xff] %vm402, %v463
        $region52: #{tpu_custom_call.1} parent=43 // pred_fallthru
          _
        %v469 = vld [vmem:[%s304] sm:$0xff]
        %v470 = vld [vmem:[%s2] sm:$0xff]
        %v471 = vld [vmem:[%s2 + $0x8] sm:$0xff]
        %v472 = vld [vmem:[%s2 + $0x10] sm:$0xff]
        %v473 = vld [vmem:[%s2 + $0x18] sm:$0xff]
        %vm474 = vcmask 261120
        %v476 = vsel %vm474, %v469, 0
        %478 = vmatprep.subr.mxu0 0.0
        %479 = vmatpush1.msra.mxu0 %v470
        %480 = vmatprep.subr.mxu0 0.0
        %481 = vmatpush1.msra.mxu0 %v471
        %482 = vmatprep.subr.mxu0 0.0
        %483 = vmatpush1.msra.mxu0 %v472
        %484 = vmatprep.subr.mxu0 0.0
        %485 = vmatpush1.msra.mxu0 %v473
        %486 = vmatprep.subr.mxu0 0.0
        %487 = vmatpush1.msra.mxu0 0.0
        %488 = vmatprep.subr.mxu0 0.0
        %489 = vmatpush1.msra.mxu0 0.0
        %490 = vmatprep.subr.mxu0 0.0
        %491 = vmatpush1.msra.mxu0 0.0
        %492 = vmatprep.subr.mxu0 0.0
        %493 = vmatpush1.msra.mxu0 0.0
        %494 = vmatprep.subr.mxu0 0.0
        %495 = vmatpush1.msra.mxu0 0.0
        %496 = vmatprep.subr.mxu0 0.0
        %497 = vmatpush1.msra.mxu0 0.0
        %498 = vmatprep.subr.mxu0 0.0
        %499 = vmatpush1.msra.mxu0 0.0
        %500 = vmatprep.subr.mxu0 0.0
        %501 = vmatpush1.msra.mxu0 0.0
        %502 = vmatprep.subr.mxu0 0.0
        %503 = vmatpush1.msra.mxu0 0.0
        %504 = vmatprep.subr.mxu0 0.0
        %505 = vmatpush1.msra.mxu0 0.0
        %506 = vmatprep.subr.mxu0 0.0
        %507 = vmatpush1.msra.mxu0 0.0
        %508 = vmatprep.subr.mxu0 0.0
        %509 = vmatpush1.msra.mxu0 0.0
        %510 = vmatprep.subr.mxu0 0.0
        %511 = vmatpush1.msra.mxu0 0.0
        %512 = vmatprep.subr.mxu0 0.0
        %513 = vmatpush1.msra.mxu0 0.0
        %514 = vmatprep.subr.mxu0 0.0
        %515 = vmatpush1.msra.mxu0 0.0
        %516 = vmatprep.subr.mxu0 0.0
        %517 = vmatpush1.msra.mxu0 0.0
        %518 = vmatprep.subr.mxu0 0.0
        %519 = vmatpush1.msra.mxu0 0.0
        %520 = vmatprep.subr.mxu0 0.0
        %521 = vmatpush1.msra.mxu0 0.0
        %522 = vmatprep.subr.mxu0 0.0
        %523 = vmatpush1.msra.mxu0 0.0
        %524 = vmatprep.subr.mxu0 0.0
        %525 = vmatpush1.msra.mxu0 0.0
        %526 = vmatprep.subr.mxu0 0.0
        %527 = vmatpush1.msra.mxu0 0.0
        %528 = vmatprep.subr.mxu0 0.0
        %529 = vmatpush1.msra.mxu0 0.0
        %530 = vmatprep.subr.mxu0 0.0
        %531 = vmatpush1.msra.mxu0 0.0
        %532 = vmatprep.subr.mxu0 0.0
        %533 = vmatpush1.msra.mxu0 0.0
        %534 = vmatprep.subr.mxu0 0.0
        %535 = vmatpush1.msra.mxu0 0.0
        %536 = vmatprep.subr.mxu0 0.0
        %537 = vmatpush1.msra.mxu0 0.0
        %538 = vmatprep.subr.mxu0 0.0
        %539 = vmatpush1.msra.mxu0 0.0
        %540 = vmatprep.subr.mxu0 0.0
        %541 = vmatpush1.msra.mxu0 0.0
        %542 = vmatprep.mubr.f32.mxu0 0.0
        %543 = vmatmul.mubr.f32.gmra.mrb[0].mxu0 %v476
        %v544 = vpop.f32.mrb[0].mxu0
        %v545 = vadd.f32 0.0, %v544
        %v546 = vpop.f32.mrb[0].mxu0
        %547 = vdwg.mxu0
        %v548 = vld [vmem:[#allocation2] sm:$0xff]
        %v549 = vld [vmem:[#allocation2 + $0x8] sm:$0xff]
        %vm550 = vcmask 130048
        %v552 = vsel %vm550, %v545, 0
        %v555 = vsel %vm550, %v548, 0
        %v558 = vsel %vm550, %v549, 0
        %560 = vmatprep.subr.mxu0 0.0
        %561 = vmatpush1.xpose.msra.mxu0 %v555
        %562 = vmatprep.subr.mxu0 0.0
        %563 = vmatpush1.xpose.msra.mxu0 %v558
        %564 = vmatprep.subr.mxu0 0.0
        %565 = vmatpush1.xpose.msra.mxu0 0.0
        %566 = vmatprep.subr.mxu0 0.0
        %567 = vmatpush1.xpose.msra.mxu0 0.0
        %568 = vmatprep.subr.mxu0 0.0
        %569 = vmatpush1.xpose.msra.mxu0 0.0
        %570 = vmatprep.subr.mxu0 0.0
        %571 = vmatpush1.xpose.msra.mxu0 0.0
        %572 = vmatprep.subr.mxu0 0.0
        %573 = vmatpush1.xpose.msra.mxu0 0.0
        %574 = vmatprep.subr.mxu0 0.0
        %575 = vmatpush1.xpose.msra.mxu0 0.0
        %576 = vmatprep.subr.mxu0 0.0
        %577 = vmatpush1.xpose.msra.mxu0 0.0
        %578 = vmatprep.subr.mxu0 0.0
        %579 = vmatpush1.xpose.msra.mxu0 0.0
        %580 = vmatprep.subr.mxu0 0.0
        %581 = vmatpush1.xpose.msra.mxu0 0.0
        %582 = vmatprep.subr.mxu0 0.0
        %583 = vmatpush1.xpose.msra.mxu0 0.0
        %584 = vmatprep.subr.mxu0 0.0
        %585 = vmatpush1.xpose.msra.mxu0 0.0
        %586 = vmatprep.subr.mxu0 0.0
        %587 = vmatpush1.xpose.msra.mxu0 0.0
        %588 = vmatprep.subr.mxu0 0.0
        %589 = vmatpush1.xpose.msra.mxu0 0.0
        %590 = vmatprep.subr.mxu0 0.0
        %591 = vmatpush1.xpose.msra.mxu0 0.0
        %592 = vmatprep.subr.mxu0 0.0
        %593 = vmatpush1.xpose.msra.mxu0 0.0
        %594 = vmatprep.subr.mxu0 0.0
        %595 = vmatpush1.xpose.msra.mxu0 0.0
        %596 = vmatprep.subr.mxu0 0.0
        %597 = vmatpush1.xpose.msra.mxu0 0.0
        %598 = vmatprep.subr.mxu0 0.0
        %599 = vmatpush1.xpose.msra.mxu0 0.0
        %600 = vmatprep.subr.mxu0 0.0
        %601 = vmatpush1.xpose.msra.mxu0 0.0
        %602 = vmatprep.subr.mxu0 0.0
        %603 = vmatpush1.xpose.msra.mxu0 0.0
        %604 = vmatprep.subr.mxu0 0.0
        %605 = vmatpush1.xpose.msra.mxu0 0.0
        %606 = vmatprep.subr.mxu0 0.0
        %607 = vmatpush1.xpose.msra.mxu0 0.0
        %608 = vmatprep.subr.mxu0 0.0
        %609 = vmatpush1.xpose.msra.mxu0 0.0
        %610 = vmatprep.subr.mxu0 0.0
        %611 = vmatpush1.xpose.msra.mxu0 0.0
        %612 = vmatprep.subr.mxu0 0.0
        %613 = vmatpush1.xpose.msra.mxu0 0.0
        %614 = vmatprep.subr.mxu0 0.0
        %615 = vmatpush1.xpose.msra.mxu0 0.0
        %616 = vmatprep.subr.mxu0 0.0
        %617 = vmatpush1.xpose.msra.mxu0 0.0
        %618 = vmatprep.subr.mxu0 0.0
        %619 = vmatpush1.xpose.msra.mxu0 0.0
        %620 = vmatprep.subr.mxu0 0.0
        %621 = vmatpush1.xpose.msra.mxu0 0.0
        %622 = vmatprep.subr.mxu0 0.0
        %623 = vmatpush1.xpose.msra.mxu0 0.0
        %624 = vmatprep.mubr.f32.mxu0 0.0
        %625 = vmatmul.mubr.f32.gmra.mrb[0].mxu0 %v552
        %v626 = vpop.f32.mrb[0].mxu0
        %v627 = vadd.f32 0.0, %v626
        %v628 = vpop.f32.mrb[0].mxu0
        %629 = vdwg.mxu0
        %v630 = vsel %vm550, %v627, -inf
        %631 = vmax.xlane.f32.xlu0 %v630
        %v632 = vpop.xlane.xlu0 %631
        %v633 = vsub.f32 %v627, %v632
        %v634 = vmul.f32 %v633, 1.442695
        %v635 = vpow.pop %v634
        %v636 = vsel %vm550, %v635, 0.0
        %637 = vadd.xlane.f32.xlu0 %v636
        %v638 = vpop.xlane.xlu0 %637
        %v639 = vrcp.pop %v638
        %v640 = vmul.f32 %v635, %v639
        %v641 = vld [vmem:[#allocation3] sm:$0xff]
        %v642 = vld [vmem:[#allocation3 + $0x8] sm:$0xff]
        %v644 = vsel %vm550, %v640, 0
        %646 = vmatprep.subr.mxu0 0.0
        %647 = vmatpush1.msra.mxu0 %v641
        %648 = vmatprep.subr.mxu0 0.0
        %649 = vmatpush1.msra.mxu0 %v642
        %650 = vmatprep.subr.mxu0 0.0
        %651 = vmatpush1.msra.mxu0 0.0
        %652 = vmatprep.subr.mxu0 0.0
        %653 = vmatpush1.msra.mxu0 0.0
        %654 = vmatprep.subr.mxu0 0.0
        %655 = vmatpush1.msra.mxu0 0.0
        %656 = vmatprep.subr.mxu0 0.0
        %657 = vmatpush1.msra.mxu0 0.0
        %658 = vmatprep.subr.mxu0 0.0
        %659 = vmatpush1.msra.mxu0 0.0
        %660 = vmatprep.subr.mxu0 0.0
        %661 = vmatpush1.msra.mxu0 0.0
        %662 = vmatprep.subr.mxu0 0.0
        %663 = vmatpush1.msra.mxu0 0.0
        %664 = vmatprep.subr.mxu0 0.0
        %665 = vmatpush1.msra.mxu0 0.0
        %666 = vmatprep.subr.mxu0 0.0
        %667 = vmatpush1.msra.mxu0 0.0
        %668 = vmatprep.subr.mxu0 0.0
        %669 = vmatpush1.msra.mxu0 0.0
        %670 = vmatprep.subr.mxu0 0.0
        %671 = vmatpush1.msra.mxu0 0.0
        %672 = vmatprep.subr.mxu0 0.0
        %673 = vmatpush1.msra.mxu0 0.0
        %674 = vmatprep.subr.mxu0 0.0
        %675 = vmatpush1.msra.mxu0 0.0
        %676 = vmatprep.subr.mxu0 0.0
        %677 = vmatpush1.msra.mxu0 0.0
        %678 = vmatprep.subr.mxu0 0.0
        %679 = vmatpush1.msra.mxu0 0.0
        %680 = vmatprep.subr.mxu0 0.0
        %681 = vmatpush1.msra.mxu0 0.0
        %682 = vmatprep.subr.mxu0 0.0
        %683 = vmatpush1.msra.mxu0 0.0
        %684 = vmatprep.subr.mxu0 0.0
        %685 = vmatpush1.msra.mxu0 0.0
        %686 = vmatprep.subr.mxu0 0.0
        %687 = vmatpush1.msra.mxu0 0.0
        %688 = vmatprep.subr.mxu0 0.0
        %689 = vmatpush1.msra.mxu0 0.0
        %690 = vmatprep.subr.mxu0 0.0
        %691 = vmatpush1.msra.mxu0 0.0
        %692 = vmatprep.subr.mxu0 0.0
        %693 = vmatpush1.msra.mxu0 0.0
        %694 = vmatprep.subr.mxu0 0.0
        %695 = vmatpush1.msra.mxu0 0.0
        %696 = vmatprep.subr.mxu0 0.0
        %697 = vmatpush1.msra.mxu0 0.0
        %698 = vmatprep.subr.mxu0 0.0
        %699 = vmatpush1.msra.mxu0 0.0
        %700 = vmatprep.subr.mxu0 0.0
        %701 = vmatpush1.msra.mxu0 0.0
        %702 = vmatprep.subr.mxu0 0.0
        %703 = vmatpush1.msra.mxu0 0.0
        %704 = vmatprep.subr.mxu0 0.0
        %705 = vmatpush1.msra.mxu0 0.0
        %706 = vmatprep.subr.mxu0 0.0
        %707 = vmatpush1.msra.mxu0 0.0
        %708 = vmatprep.subr.mxu0 0.0
        %709 = vmatpush1.msra.mxu0 0.0
        %710 = vmatprep.mubr.f32.mxu0 0.0
        %711 = vmatmul.mubr.f32.gmra.mrb[0].mxu0 %v644
        %v712 = vpop.f32.mrb[0].mxu0
        %v713 = vadd.f32 0.0, %v712
        %v714 = vpop.f32.mrb[0].mxu0
        %715 = vdwg.mxu0
        %716 = vst.msk [vmem:[#allocation4] sm:$0xff] %vm550, %v713
        %s717 = scalar_lea.vmem [#allocation2], 16
        %v718 = vld [vmem:[%s717] sm:$0xff]
        %v719 = vld [vmem:[%s717 + $0x8] sm:$0xff]
        %720 = vrot.lane.b32.xlu0 %v545, 112
        %v721 = vpop.permute.xlu0 %720
        %v722 = vsel %vm550, %v721, 0
        %v725 = vsel %vm550, %v718, 0
        %v728 = vsel %vm550, %v719, 0
        %730 = vmatprep.subr.mxu0 0.0
        %731 = vmatpush1.xpose.msra.mxu0 %v725
        %732 = vmatprep.subr.mxu0 0.0
        %733 = vmatpush1.xpose.msra.mxu0 %v728
        %734 = vmatprep.subr.mxu0 0.0
        %735 = vmatpush1.xpose.msra.mxu0 0.0
        %736 = vmatprep.subr.mxu0 0.0
        %737 = vmatpush1.xpose.msra.mxu0 0.0
        %738 = vmatprep.subr.mxu0 0.0
        %739 = vmatpush1.xpose.msra.mxu0 0.0
        %740 = vmatprep.subr.mxu0 0.0
        %741 = vmatpush1.xpose.msra.mxu0 0.0
        %742 = vmatprep.subr.mxu0 0.0
        %743 = vmatpush1.xpose.msra.mxu0 0.0
        %744 = vmatprep.subr.mxu0 0.0
        %745 = vmatpush1.xpose.msra.mxu0 0.0
        %746 = vmatprep.subr.mxu0 0.0
        %747 = vmatpush1.xpose.msra.mxu0 0.0
        %748 = vmatprep.subr.mxu0 0.0
        %749 = vmatpush1.xpose.msra.mxu0 0.0
        %750 = vmatprep.subr.mxu0 0.0
        %751 = vmatpush1.xpose.msra.mxu0 0.0
        %752 = vmatprep.subr.mxu0 0.0
        %753 = vmatpush1.xpose.msra.mxu0 0.0
        %754 = vmatprep.subr.mxu0 0.0
        %755 = vmatpush1.xpose.msra.mxu0 0.0
        %756 = vmatprep.subr.mxu0 0.0
        %757 = vmatpush1.xpose.msra.mxu0 0.0
        %758 = vmatprep.subr.mxu0 0.0
        %759 = vmatpush1.xpose.msra.mxu0 0.0
        %760 = vmatprep.subr.mxu0 0.0
        %761 = vmatpush1.xpose.msra.mxu0 0.0
        %762 = vmatprep.subr.mxu0 0.0
        %763 = vmatpush1.xpose.msra.mxu0 0.0
        %764 = vmatprep.subr.mxu0 0.0
        %765 = vmatpush1.xpose.msra.mxu0 0.0
        %766 = vmatprep.subr.mxu0 0.0
        %767 = vmatpush1.xpose.msra.mxu0 0.0
        %768 = vmatprep.subr.mxu0 0.0
        %769 = vmatpush1.xpose.msra.mxu0 0.0
        %770 = vmatprep.subr.mxu0 0.0
        %771 = vmatpush1.xpose.msra.mxu0 0.0
        %772 = vmatprep.subr.mxu0 0.0
        %773 = vmatpush1.xpose.msra.mxu0 0.0
        %774 = vmatprep.subr.mxu0 0.0
        %775 = vmatpush1.xpose.msra.mxu0 0.0
        %776 = vmatprep.subr.mxu0 0.0
        %777 = vmatpush1.xpose.msra.mxu0 0.0
        %778 = vmatprep.subr.mxu0 0.0
        %779 = vmatpush1.xpose.msra.mxu0 0.0
        %780 = vmatprep.subr.mxu0 0.0
        %781 = vmatpush1.xpose.msra.mxu0 0.0
        %782 = vmatprep.subr.mxu0 0.0
        %783 = vmatpush1.xpose.msra.mxu0 0.0
        %784 = vmatprep.subr.mxu0 0.0
        %785 = vmatpush1.xpose.msra.mxu0 0.0
        %786 = vmatprep.subr.mxu0 0.0
        %787 = vmatpush1.xpose.msra.mxu0 0.0
        %788 = vmatprep.subr.mxu0 0.0
        %789 = vmatpush1.xpose.msra.mxu0 0.0
        %790 = vmatprep.subr.mxu0 0.0
        %791 = vmatpush1.xpose.msra.mxu0 0.0
        %792 = vmatprep.subr.mxu0 0.0
        %793 = vmatpush1.xpose.msra.mxu0 0.0
        %794 = vmatprep.mubr.f32.mxu0 0.0
        %795 = vmatmul.mubr.f32.gmra.mrb[0].mxu0 %v722
        %v796 = vpop.f32.mrb[0].mxu0
        %v797 = vadd.f32 0.0, %v796
        %v798 = vpop.f32.mrb[0].mxu0
        %799 = vdwg.mxu0
        %v800 = vsel %vm550, %v797, -inf
        %801 = vmax.xlane.f32.xlu0 %v800
        %v802 = vpop.xlane.xlu0 %801
        %v803 = vsub.f32 %v797, %v802
        %v804 = vmul.f32 %v803, 1.442695
        %v805 = vpow.pop %v804
        %v806 = vsel %vm550, %v805, 0.0
        %807 = vadd.xlane.f32.xlu0 %v806
        %v808 = vpop.xlane.xlu0 %807
        %v809 = vrcp.pop %v808
        %v810 = vmul.f32 %v805, %v809
        %s811 = scalar_lea.vmem [#allocation3], 16
        %v812 = vld [vmem:[%s811] sm:$0xff]
        %v813 = vld [vmem:[%s811 + $0x8] sm:$0xff]
        %v815 = vsel %vm550, %v810, 0
        %817 = vmatprep.subr.mxu0 0.0
        %818 = vmatpush1.msra.mxu0 %v812
        %819 = vmatprep.subr.mxu0 0.0
        %820 = vmatpush1.msra.mxu0 %v813
        %821 = vmatprep.subr.mxu0 0.0
        %822 = vmatpush1.msra.mxu0 0.0
        %823 = vmatprep.subr.mxu0 0.0
        %824 = vmatpush1.msra.mxu0 0.0
        %825 = vmatprep.subr.mxu0 0.0
        %826 = vmatpush1.msra.mxu0 0.0
        %827 = vmatprep.subr.mxu0 0.0
        %828 = vmatpush1.msra.mxu0 0.0
        %829 = vmatprep.subr.mxu0 0.0
        %830 = vmatpush1.msra.mxu0 0.0
        %831 = vmatprep.subr.mxu0 0.0
        %832 = vmatpush1.msra.mxu0 0.0
        %833 = vmatprep.subr.mxu0 0.0
        %834 = vmatpush1.msra.mxu0 0.0
        %835 = vmatprep.subr.mxu0 0.0
        %836 = vmatpush1.msra.mxu0 0.0
        %837 = vmatprep.subr.mxu0 0.0
        %838 = vmatpush1.msra.mxu0 0.0
        %839 = vmatprep.subr.mxu0 0.0
        %840 = vmatpush1.msra.mxu0 0.0
        %841 = vmatprep.subr.mxu0 0.0
        %842 = vmatpush1.msra.mxu0 0.0
        %843 = vmatprep.subr.mxu0 0.0
        %844 = vmatpush1.msra.mxu0 0.0
        %845 = vmatprep.subr.mxu0 0.0
        %846 = vmatpush1.msra.mxu0 0.0
        %847 = vmatprep.subr.mxu0 0.0
        %848 = vmatpush1.msra.mxu0 0.0
        %849 = vmatprep.subr.mxu0 0.0
        %850 = vmatpush1.msra.mxu0 0.0
        %851 = vmatprep.subr.mxu0 0.0
        %852 = vmatpush1.msra.mxu0 0.0
        %853 = vmatprep.subr.mxu0 0.0
        %854 = vmatpush1.msra.mxu0 0.0
        %855 = vmatprep.subr.mxu0 0.0
        %856 = vmatpush1.msra.mxu0 0.0
        %857 = vmatprep.subr.mxu0 0.0
        %858 = vmatpush1.msra.mxu0 0.0
        %859 = vmatprep.subr.mxu0 0.0
        %860 = vmatpush1.msra.mxu0 0.0
        %861 = vmatprep.subr.mxu0 0.0
        %862 = vmatpush1.msra.mxu0 0.0
        %863 = vmatprep.subr.mxu0 0.0
        %864 = vmatpush1.msra.mxu0 0.0
        %865 = vmatprep.subr.mxu0 0.0
        %866 = vmatpush1.msra.mxu0 0.0
        %867 = vmatprep.subr.mxu0 0.0
        %868 = vmatpush1.msra.mxu0 0.0
        %869 = vmatprep.subr.mxu0 0.0
        %870 = vmatpush1.msra.mxu0 0.0
        %871 = vmatprep.subr.mxu0 0.0
        %872 = vmatpush1.msra.mxu0 0.0
        %873 = vmatprep.subr.mxu0 0.0
        %874 = vmatpush1.msra.mxu0 0.0
        %875 = vmatprep.subr.mxu0 0.0
        %876 = vmatpush1.msra.mxu0 0.0
        %877 = vmatprep.subr.mxu0 0.0
        %878 = vmatpush1.msra.mxu0 0.0
        %879 = vmatprep.subr.mxu0 0.0
        %880 = vmatpush1.msra.mxu0 0.0
        %881 = vmatprep.mubr.f32.mxu0 0.0
        %882 = vmatmul.mubr.f32.gmra.mrb[0].mxu0 %v815
        %v883 = vpop.f32.mrb[0].mxu0
        %v884 = vadd.f32 0.0, %v883
        %v885 = vpop.f32.mrb[0].mxu0
        %886 = vdwg.mxu0
        %888 = vrot.lane.b32.xlu0 %v884, 16
        %v889 = vpop.permute.xlu0 %888
        %vm891 = vcmask 261248
        %892 = vst.msk [vmem:[#allocation4] sm:$0xff] %vm891, %v889
        %s893 = scalar_lea.vmem [#allocation2], 32
        %v894 = vld [vmem:[%s893] sm:$0xff]
        %v895 = vld [vmem:[%s893 + $0x8] sm:$0xff]
        %896 = vrot.lane.b32.xlu0 %v545, 96
        %v897 = vpop.permute.xlu0 %896
        %v898 = vsel %vm550, %v897, 0
        %v901 = vsel %vm550, %v894, 0
        %v904 = vsel %vm550, %v895, 0
        %906 = vmatprep.subr.mxu0 0.0
        %907 = vmatpush1.xpose.msra.mxu0 %v901
        %908 = vmatprep.subr.mxu0 0.0
        %909 = vmatpush1.xpose.msra.mxu0 %v904
        %910 = vmatprep.subr.mxu0 0.0
        %911 = vmatpush1.xpose.msra.mxu0 0.0
        %912 = vmatprep.subr.mxu0 0.0
        %913 = vmatpush1.xpose.msra.mxu0 0.0
        %914 = vmatprep.subr.mxu0 0.0
        %915 = vmatpush1.xpose.msra.mxu0 0.0
        %916 = vmatprep.subr.mxu0 0.0
        %917 = vmatpush1.xpose.msra.mxu0 0.0
        %918 = vmatprep.subr.mxu0 0.0
        %919 = vmatpush1.xpose.msra.mxu0 0.0
        %920 = vmatprep.subr.mxu0 0.0
        %921 = vmatpush1.xpose.msra.mxu0 0.0
        %922 = vmatprep.subr.mxu0 0.0
        %923 = vmatpush1.xpose.msra.mxu0 0.0
        %924 = vmatprep.subr.mxu0 0.0
        %925 = vmatpush1.xpose.msra.mxu0 0.0
        %926 = vmatprep.subr.mxu0 0.0
        %927 = vmatpush1.xpose.msra.mxu0 0.0
        %928 = vmatprep.subr.mxu0 0.0
        %929 = vmatpush1.xpose.msra.mxu0 0.0
        %930 = vmatprep.subr.mxu0 0.0
        %931 = vmatpush1.xpose.msra.mxu0 0.0
        %932 = vmatprep.subr.mxu0 0.0
        %933 = vmatpush1.xpose.msra.mxu0 0.0
        %934 = vmatprep.subr.mxu0 0.0
        %935 = vmatpush1.xpose.msra.mxu0 0.0
        %936 = vmatprep.subr.mxu0 0.0
        %937 = vmatpush1.xpose.msra.mxu0 0.0
        %938 = vmatprep.subr.mxu0 0.0
        %939 = vmatpush1.xpose.msra.mxu0 0.0
        %940 = vmatprep.subr.mxu0 0.0
        %941 = vmatpush1.xpose.msra.mxu0 0.0
        %942 = vmatprep.subr.mxu0 0.0
        %943 = vmatpush1.xpose.msra.mxu0 0.0
        %944 = vmatprep.subr.mxu0 0.0
        %945 = vmatpush1.xpose.msra.mxu0 0.0
        %946 = vmatprep.subr.mxu0 0.0
        %947 = vmatpush1.xpose.msra.mxu0 0.0
        %948 = vmatprep.subr.mxu0 0.0
        %949 = vmatpush1.xpose.msra.mxu0 0.0
        %950 = vmatprep.subr.mxu0 0.0
        %951 = vmatpush1.xpose.msra.mxu0 0.0
        %952 = vmatprep.subr.mxu0 0.0
        %953 = vmatpush1.xpose.msra.mxu0 0.0
        %954 = vmatprep.subr.mxu0 0.0
        %955 = vmatpush1.xpose.msra.mxu0 0.0
        %956 = vmatprep.subr.mxu0 0.0
        %957 = vmatpush1.xpose.msra.mxu0 0.0
        %958 = vmatprep.subr.mxu0 0.0
        %959 = vmatpush1.xpose.msra.mxu0 0.0
        %960 = vmatprep.subr.mxu0 0.0
        %961 = vmatpush1.xpose.msra.mxu0 0.0
        %962 = vmatprep.subr.mxu0 0.0
        %963 = vmatpush1.xpose.msra.mxu0 0.0
        %964 = vmatprep.subr.mxu0 0.0
        %965 = vmatpush1.xpose.msra.mxu0 0.0
        %966 = vmatprep.subr.mxu0 0.0
        %967 = vmatpush1.xpose.msra.mxu0 0.0
        %968 = vmatprep.subr.mxu0 0.0
        %969 = vmatpush1.xpose.msra.mxu0 0.0
        %970 = vmatprep.mubr.f32.mxu0 0.0
        %971 = vmatmul.mubr.f32.gmra.mrb[0].mxu0 %v898
        %v972 = vpop.f32.mrb[0].mxu0
        %v973 = vadd.f32 0.0, %v972
        %v974 = vpop.f32.mrb[0].mxu0
        %975 = vdwg.mxu0
        %v976 = vsel %vm550, %v973, -inf
        %977 = vmax.xlane.f32.xlu0 %v976
        %v978 = vpop.xlane.xlu0 %977
        %v979 = vsub.f32 %v973, %v978
        %v980 = vmul.f32 %v979, 1.442695
        %v981 = vpow.pop %v980
        %v982 = vsel %vm550, %v981, 0.0
        %983 = vadd.xlane.f32.xlu0 %v982
        %v984 = vpop.xlane.xlu0 %983
        %v985 = vrcp.pop %v984
        %v986 = vmul.f32 %v981, %v985
        %s987 = scalar_lea.vmem [#allocation3], 32
        %v988 = vld [vmem:[%s987] sm:$0xff]
        %v989 = vld [vmem:[%s987 + $0x8] sm:$0xff]
        %v991 = vsel %vm550, %v986, 0
        %993 = vmatprep.subr.mxu0 0.0
        %994 = vmatpush1.msra.mxu0 %v988
        %995 = vmatprep.subr.mxu0 0.0
        %996 = vmatpush1.msra.mxu0 %v989
        %997 = vmatprep.subr.mxu0 0.0
        %998 = vmatpush1.msra.mxu0 0.0
        %999 = vmatprep.subr.mxu0 0.0
        %1000 = vmatpush1.msra.mxu0 0.0
        %1001 = vmatprep.subr.mxu0 0.0
        %1002 = vmatpush1.msra.mxu0 0.0
        %1003 = vmatprep.subr.mxu0 0.0
        %1004 = vmatpush1.msra.mxu0 0.0
        %1005 = vmatprep.subr.mxu0 0.0
        %1006 = vmatpush1.msra.mxu0 0.0
        %1007 = vmatprep.subr.mxu0 0.0
        %1008 = vmatpush1.msra.mxu0 0.0
        %1009 = vmatprep.subr.mxu0 0.0
        %1010 = vmatpush1.msra.mxu0 0.0
        %1011 = vmatprep.subr.mxu0 0.0
        %1012 = vmatpush1.msra.mxu0 0.0
        %1013 = vmatprep.subr.mxu0 0.0
        %1014 = vmatpush1.msra.mxu0 0.0
        %1015 = vmatprep.subr.mxu0 0.0
        %1016 = vmatpush1.msra.mxu0 0.0
        %1017 = vmatprep.subr.mxu0 0.0
        %1018 = vmatpush1.msra.mxu0 0.0
        %1019 = vmatprep.subr.mxu0 0.0
        %1020 = vmatpush1.msra.mxu0 0.0
        %1021 = vmatprep.subr.mxu0 0.0
        %1022 = vmatpush1.msra.mxu0 0.0
        %1023 = vmatprep.subr.mxu0 0.0
        %1024 = vmatpush1.msra.mxu0 0.0
        %1025 = vmatprep.subr.mxu0 0.0
        %1026 = vmatpush1.msra.mxu0 0.0
        %1027 = vmatprep.subr.mxu0 0.0
        %1028 = vmatpush1.msra.mxu0 0.0
        %1029 = vmatprep.subr.mxu0 0.0
        %1030 = vmatpush1.msra.mxu0 0.0
        %1031 = vmatprep.subr.mxu0 0.0
        %1032 = vmatpush1.msra.mxu0 0.0
        %1033 = vmatprep.subr.mxu0 0.0
        %1034 = vmatpush1.msra.mxu0 0.0
        %1035 = vmatprep.subr.mxu0 0.0
        %1036 = vmatpush1.msra.mxu0 0.0
        %1037 = vmatprep.subr.mxu0 0.0
        %1038 = vmatpush1.msra.mxu0 0.0
        %1039 = vmatprep.subr.mxu0 0.0
        %1040 = vmatpush1.msra.mxu0 0.0
        %1041 = vmatprep.subr.mxu0 0.0
        %1042 = vmatpush1.msra.mxu0 0.0
        %1043 = vmatprep.subr.mxu0 0.0
        %1044 = vmatpush1.msra.mxu0 0.0
        %1045 = vmatprep.subr.mxu0 0.0
        %1046 = vmatpush1.msra.mxu0 0.0
        %1047 = vmatprep.subr.mxu0 0.0
        %1048 = vmatpush1.msra.mxu0 0.0
        %1049 = vmatprep.subr.mxu0 0.0
        %1050 = vmatpush1.msra.mxu0 0.0
        %1051 = vmatprep.subr.mxu0 0.0
        %1052 = vmatpush1.msra.mxu0 0.0
        %1053 = vmatprep.subr.mxu0 0.0
        %1054 = vmatpush1.msra.mxu0 0.0
        %1055 = vmatprep.subr.mxu0 0.0
        %1056 = vmatpush1.msra.mxu0 0.0
        %1057 = vmatprep.mubr.f32.mxu0 0.0
        %1058 = vmatmul.mubr.f32.gmra.mrb[0].mxu0 %v991
        %v1059 = vpop.f32.mrb[0].mxu0
        %v1060 = vadd.f32 0.0, %v1059
        %v1061 = vpop.f32.mrb[0].mxu0
        %1062 = vdwg.mxu0
        %1064 = vrot.lane.b32.xlu0 %v1060, 32
        %v1065 = vpop.permute.xlu0 %1064
        %vm1067 = vcmask 392448
        %1068 = vst.msk [vmem:[#allocation4] sm:$0xff] %vm1067, %v1065
        %s1069 = scalar_lea.vmem [#allocation2], 48
        %v1070 = vld [vmem:[%s1069] sm:$0xff]
        %v1071 = vld [vmem:[%s1069 + $0x8] sm:$0xff]
        %1072 = vrot.lane.b32.xlu0 %v545, 80
        %v1073 = vpop.permute.xlu0 %1072
        %v1074 = vsel %vm550, %v1073, 0
        %v1077 = vsel %vm550, %v1070, 0
        %v1080 = vsel %vm550, %v1071, 0
        %1082 = vmatprep.subr.mxu0 0.0
        %1083 = vmatpush1.xpose.msra.mxu0 %v1077
        %1084 = vmatprep.subr.mxu0 0.0
        %1085 = vmatpush1.xpose.msra.mxu0 %v1080
        %1086 = vmatprep.subr.mxu0 0.0
        %1087 = vmatpush1.xpose.msra.mxu0 0.0
        %1088 = vmatprep.subr.mxu0 0.0
        %1089 = vmatpush1.xpose.msra.mxu0 0.0
        %1090 = vmatprep.subr.mxu0 0.0
        %1091 = vmatpush1.xpose.msra.mxu0 0.0
        %1092 = vmatprep.subr.mxu0 0.0
        %1093 = vmatpush1.xpose.msra.mxu0 0.0
        %1094 = vmatprep.subr.mxu0 0.0
        %1095 = vmatpush1.xpose.msra.mxu0 0.0
        %1096 = vmatprep.subr.mxu0 0.0
        %1097 = vmatpush1.xpose.msra.mxu0 0.0
        %1098 = vmatprep.subr.mxu0 0.0
        %1099 = vmatpush1.xpose.msra.mxu0 0.0
        %1100 = vmatprep.subr.mxu0 0.0
        %1101 = vmatpush1.xpose.msra.mxu0 0.0
        %1102 = vmatprep.subr.mxu0 0.0
        %1103 = vmatpush1.xpose.msra.mxu0 0.0
        %1104 = vmatprep.subr.mxu0 0.0
        %1105 = vmatpush1.xpose.msra.mxu0 0.0
        %1106 = vmatprep.subr.mxu0 0.0
        %1107 = vmatpush1.xpose.msra.mxu0 0.0
        %1108 = vmatprep.subr.mxu0 0.0
        %1109 = vmatpush1.xpose.msra.mxu0 0.0
        %1110 = vmatprep.subr.mxu0 0.0
        %1111 = vmatpush1.xpose.msra.mxu0 0.0
        %1112 = vmatprep.subr.mxu0 0.0
        %1113 = vmatpush1.xpose.msra.mxu0 0.0
        %1114 = vmatprep.subr.mxu0 0.0
        %1115 = vmatpush1.xpose.msra.mxu0 0.0
        %1116 = vmatprep.subr.mxu0 0.0
        %1117 = vmatpush1.xpose.msra.mxu0 0.0
        %1118 = vmatprep.subr.mxu0 0.0
        %1119 = vmatpush1.xpose.msra.mxu0 0.0
        %1120 = vmatprep.subr.mxu0 0.0
        %1121 = vmatpush1.xpose.msra.mxu0 0.0
        %1122 = vmatprep.subr.mxu0 0.0
        %1123 = vmatpush1.xpose.msra.mxu0 0.0
        %1124 = vmatprep.subr.mxu0 0.0
        %1125 = vmatpush1.xpose.msra.mxu0 0.0
        %1126 = vmatprep.subr.mxu0 0.0
        %1127 = vmatpush1.xpose.msra.mxu0 0.0
        %1128 = vmatprep.subr.mxu0 0.0
        %1129 = vmatpush1.xpose.msra.mxu0 0.0
        %1130 = vmatprep.subr.mxu0 0.0
        %1131 = vmatpush1.xpose.msra.mxu0 0.0
        %1132 = vmatprep.subr.mxu0 0.0
        %1133 = vmatpush1.xpose.msra.mxu0 0.0
        %1134 = vmatprep.subr.mxu0 0.0
        %1135 = vmatpush1.xpose.msra.mxu0 0.0
        %1136 = vmatprep.subr.mxu0 0.0
        %1137 = vmatpush1.xpose.msra.mxu0 0.0
        %1138 = vmatprep.subr.mxu0 0.0
        %1139 = vmatpush1.xpose.msra.mxu0 0.0
        %1140 = vmatprep.subr.mxu0 0.0
        %1141 = vmatpush1.xpose.msra.mxu0 0.0
        %1142 = vmatprep.subr.mxu0 0.0
        %1143 = vmatpush1.xpose.msra.mxu0 0.0
        %1144 = vmatprep.subr.mxu0 0.0
        %1145 = vmatpush1.xpose.msra.mxu0 0.0
        %1146 = vmatprep.mubr.f32.mxu0 0.0
        %1147 = vmatmul.mubr.f32.gmra.mrb[0].mxu0 %v1074
        %v1148 = vpop.f32.mrb[0].mxu0
        %v1149 = vadd.f32 0.0, %v1148
        %v1150 = vpop.f32.mrb[0].mxu0
        %1151 = vdwg.mxu0
        %v1152 = vsel %vm550, %v1149, -inf
        %1153 = vmax.xlane.f32.xlu0 %v1152
        %v1154 = vpop.xlane.xlu0 %1153
        %v1155 = vsub.f32 %v1149, %v1154
        %v1156 = vmul.f32 %v1155, 1.442695
        %v1157 = vpow.pop %v1156
        %v1158 = vsel %vm550, %v1157, 0.0
        %1159 = vadd.xlane.f32.xlu0 %v1158
        %v1160 = vpop.xlane.xlu0 %1159
        %v1161 = vrcp.pop %v1160
        %v1162 = vmul.f32 %v1157, %v1161
        %s1163 = scalar_lea.vmem [#allocation3], 48
        %v1164 = vld [vmem:[%s1163] sm:$0xff]
        %v1165 = vld [vmem:[%s1163 + $0x8] sm:$0xff]
        %v1167 = vsel %vm550, %v1162, 0
        %1169 = vmatprep.subr.mxu0 0.0
        %1170 = vmatpush1.msra.mxu0 %v1164
        %1171 = vmatprep.subr.mxu0 0.0
        %1172 = vmatpush1.msra.mxu0 %v1165
        %1173 = vmatprep.subr.mxu0 0.0
        %1174 = vmatpush1.msra.mxu0 0.0
        %1175 = vmatprep.subr.mxu0 0.0
        %1176 = vmatpush1.msra.mxu0 0.0
        %1177 = vmatprep.subr.mxu0 0.0
        %1178 = vmatpush1.msra.mxu0 0.0
        %1179 = vmatprep.subr.mxu0 0.0
        %1180 = vmatpush1.msra.mxu0 0.0
        %1181 = vmatprep.subr.mxu0 0.0
        %1182 = vmatpush1.msra.mxu0 0.0
        %1183 = vmatprep.subr.mxu0 0.0
        %1184 = vmatpush1.msra.mxu0 0.0
        %1185 = vmatprep.subr.mxu0 0.0
        %1186 = vmatpush1.msra.mxu0 0.0
        %1187 = vmatprep.subr.mxu0 0.0
        %1188 = vmatpush1.msra.mxu0 0.0
        %1189 = vmatprep.subr.mxu0 0.0
        %1190 = vmatpush1.msra.mxu0 0.0
        %1191 = vmatprep.subr.mxu0 0.0
        %1192 = vmatpush1.msra.mxu0 0.0
        %1193 = vmatprep.subr.mxu0 0.0
        %1194 = vmatpush1.msra.mxu0 0.0
        %1195 = vmatprep.subr.mxu0 0.0
        %1196 = vmatpush1.msra.mxu0 0.0
        %1197 = vmatprep.subr.mxu0 0.0
        %1198 = vmatpush1.msra.mxu0 0.0
        %1199 = vmatprep.subr.mxu0 0.0
        %1200 = vmatpush1.msra.mxu0 0.0
        %1201 = vmatprep.subr.mxu0 0.0
        %1202 = vmatpush1.msra.mxu0 0.0
        %1203 = vmatprep.subr.mxu0 0.0
        %1204 = vmatpush1.msra.mxu0 0.0
        %1205 = vmatprep.subr.mxu0 0.0
        %1206 = vmatpush1.msra.mxu0 0.0
        %1207 = vmatprep.subr.mxu0 0.0
        %1208 = vmatpush1.msra.mxu0 0.0
        %1209 = vmatprep.subr.mxu0 0.0
        %1210 = vmatpush1.msra.mxu0 0.0
        %1211 = vmatprep.subr.mxu0 0.0
        %1212 = vmatpush1.msra.mxu0 0.0
        %1213 = vmatprep.subr.mxu0 0.0
        %1214 = vmatpush1.msra.mxu0 0.0
        %1215 = vmatprep.subr.mxu0 0.0
        %1216 = vmatpush1.msra.mxu0 0.0
        %1217 = vmatprep.subr.mxu0 0.0
        %1218 = vmatpush1.msra.mxu0 0.0
        %1219 = vmatprep.subr.mxu0 0.0
        %1220 = vmatpush1.msra.mxu0 0.0
        %1221 = vmatprep.subr.mxu0 0.0
        %1222 = vmatpush1.msra.mxu0 0.0
        %1223 = vmatprep.subr.mxu0 0.0
        %1224 = vmatpush1.msra.mxu0 0.0
        %1225 = vmatprep.subr.mxu0 0.0
        %1226 = vmatpush1.msra.mxu0 0.0
        %1227 = vmatprep.subr.mxu0 0.0
        %1228 = vmatpush1.msra.mxu0 0.0
        %1229 = vmatprep.subr.mxu0 0.0
        %1230 = vmatpush1.msra.mxu0 0.0
        %1231 = vmatprep.subr.mxu0 0.0
        %1232 = vmatpush1.msra.mxu0 0.0
        %1233 = vmatprep.mubr.f32.mxu0 0.0
        %1234 = vmatmul.mubr.f32.gmra.mrb[0].mxu0 %v1167
        %v1235 = vpop.f32.mrb[0].mxu0
        %v1236 = vadd.f32 0.0, %v1235
        %v1237 = vpop.f32.mrb[0].mxu0
        %1238 = vdwg.mxu0
        %1240 = vrot.lane.b32.xlu0 %v1236, 48
        %v1241 = vpop.permute.xlu0 %1240
        %vm1243 = vcmask 523648
        %1244 = vst.msk [vmem:[#allocation4] sm:$0xff] %vm1243, %v1241
        %v1245 = vld [vmem:[#allocation4] sm:$0xff]
        %v1246 = vld [vmem:[%s4] sm:$0xff]
        %v1247 = vld [vmem:[%s4 + $0x8] sm:$0xff]
        %v1248 = vld [vmem:[%s4 + $0x10] sm:$0xff]
        %v1249 = vld [vmem:[%s4 + $0x18] sm:$0xff]
        %v1250 = vld [vmem:[%s4 + $0x20] sm:$0xff]
        %v1251 = vld [vmem:[%s4 + $0x28] sm:$0xff]
        %v1252 = vld [vmem:[%s4 + $0x30] sm:$0xff]
        %v1253 = vld [vmem:[%s4 + $0x38] sm:$0xff]
        %v1254 = vld [vmem:[%s5] sm:$0x1]
        %v1256 = vlaneseq
        %v1257 = vshrl.u32 %v1256, 7
        %v1258 = vsub.s32 0, %v1257
        %v1259 = vrot.slane %v1254, %v1258
        %vm1261 = vcmask 523264
        %v1263 = vsel %vm1261, %v1245, 0
        %1265 = vmatprep.subr.mxu0 0.0
        %1266 = vmatpush1.msra.mxu0 %v1246
        %1267 = vmatprep.subr.mxu0 0.0
        %1268 = vmatpush1.msra.mxu0 %v1247
        %1269 = vmatprep.subr.mxu0 0.0
        %1270 = vmatpush1.msra.mxu0 %v1248
        %1271 = vmatprep.subr.mxu0 0.0
        %1272 = vmatpush1.msra.mxu0 %v1249
        %1273 = vmatprep.subr.mxu0 0.0
        %1274 = vmatpush1.msra.mxu0 %v1250
        %1275 = vmatprep.subr.mxu0 0.0
        %1276 = vmatpush1.msra.mxu0 %v1251
        %1277 = vmatprep.subr.mxu0 0.0
        %1278 = vmatpush1.msra.mxu0 %v1252
        %1279 = vmatprep.subr.mxu0 0.0
        %1280 = vmatpush1.msra.mxu0 %v1253
        %1281 = vmatprep.subr.mxu0 0.0
        %1282 = vmatpush1.msra.mxu0 0.0
        %1283 = vmatprep.subr.mxu0 0.0
        %1284 = vmatpush1.msra.mxu0 0.0
        %1285 = vmatprep.subr.mxu0 0.0
        %1286 = vmatpush1.msra.mxu0 0.0
        %1287 = vmatprep.subr.mxu0 0.0
        %1288 = vmatpush1.msra.mxu0 0.0
        %1289 = vmatprep.subr.mxu0 0.0
        %1290 = vmatpush1.msra.mxu0 0.0
        %1291 = vmatprep.subr.mxu0 0.0
        %1292 = vmatpush1.msra.mxu0 0.0
        %1293 = vmatprep.subr.mxu0 0.0
        %1294 = vmatpush1.msra.mxu0 0.0
        %1295 = vmatprep.subr.mxu0 0.0
        %1296 = vmatpush1.msra.mxu0 0.0
        %1297 = vmatprep.subr.mxu0 0.0
        %1298 = vmatpush1.msra.mxu0 0.0
        %1299 = vmatprep.subr.mxu0 0.0
        %1300 = vmatpush1.msra.mxu0 0.0
        %1301 = vmatprep.subr.mxu0 0.0
        %1302 = vmatpush1.msra.mxu0 0.0
        %1303 = vmatprep.subr.mxu0 0.0
        %1304 = vmatpush1.msra.mxu0 0.0
        %1305 = vmatprep.subr.mxu0 0.0
        %1306 = vmatpush1.msra.mxu0 0.0
        %1307 = vmatprep.subr.mxu0 0.0
        %1308 = vmatpush1.msra.mxu0 0.0
        %1309 = vmatprep.subr.mxu0 0.0
        %1310 = vmatpush1.msra.mxu0 0.0
        %1311 = vmatprep.subr.mxu0 0.0
        %1312 = vmatpush1.msra.mxu0 0.0
        %1313 = vmatprep.subr.mxu0 0.0
        %1314 = vmatpush1.msra.mxu0 0.0
        %1315 = vmatprep.subr.mxu0 0.0
        %1316 = vmatpush1.msra.mxu0 0.0
        %1317 = vmatprep.subr.mxu0 0.0
        %1318 = vmatpush1.msra.mxu0 0.0
        %1319 = vmatprep.subr.mxu0 0.0
        %1320 = vmatpush1.msra.mxu0 0.0
        %1321 = vmatprep.subr.mxu0 0.0
        %1322 = vmatpush1.msra.mxu0 0.0
        %1323 = vmatprep.subr.mxu0 0.0
        %1324 = vmatpush1.msra.mxu0 0.0
        %1325 = vmatprep.subr.mxu0 0.0
        %1326 = vmatpush1.msra.mxu0 0.0
        %1327 = vmatprep.subr.mxu0 0.0
        %1328 = vmatpush1.msra.mxu0 0.0
        %1329 = vmatprep.mubr.f32.mxu0 0.0
        %1330 = vmatmul.mubr.f32.gmra.mrb[0].mxu0 %v1263
        %v1331 = vpop.f32.mrb[0].mxu0
        %v1332 = vadd.f32 %v1259, %v1331
        %v1333 = vpop.f32.mrb[0].mxu0
        %1334 = vdwg.mxu0
        %1335 = vst.msk [vmem:[%s296] sm:$0xff] %vm474, %v1332
        %s1336 = sand.u32 %s181, 1
        %s1337 = scalar_lea.sflag [#allocation7], %s1336
        %s1338 = sand.u32 %s181, 1
        %s1339 = smul.addr %s1338, 8
        %s1340 = scalar_lea.vmem [#allocation8], %s1339
        // Predicated region
        $region53: #{tpu_custom_call.1} parent=43 // pred_check
          %p1341 = pneg %p191
        $region54: #{tpu_custom_call.1} parent=43 // pred_check_branch
          %1343 = sbr.rel (%p1341) target = $region56
        $region55: #{tpu_custom_call.1} parent=43 // pred_region
          %s1345 = ssub.s32 128, 128
          %1346 = vsyncadd %s1337, %s1345
          %s1347 = smul.addr %s25, 2
          %s1348 = sadd.s32 %s26, %s1347
          %s1349 = smul.addr %s1348, 128
          %s1350 = scalar_lea.hbm %s6, %s1349
          %s1352 = sshll.u32 %s1340, 4
          %s1353 = int_to_ptr.vmem [resolvable:$true] %s1352
          %1355 = dma.vmem_to_hbm [thread:$0]  %s1353, 128, %s1350, %s1337
        $region56: #{tpu_custom_call.1} parent=43 // pred_fallthru
          _
      $region44: #{tpu_custom_call.1} parent=5 // pred_fallthru
        _
      %p1356 = scmp.le.s32.totalorder 2, %s16
      // Predicated region
      $region57: #{tpu_custom_call.1} parent=5 // pred_check
        %p1357 = pneg %p1356
      $region58: #{tpu_custom_call.1} parent=5 // pred_check_branch
        %1359 = sbr.rel (%p1357) target = $region60
      $region59: #{tpu_custom_call.1} parent=5 // pred_region
        %s1360 = ssub.s32 %s16, 2
        // Predicated region
        $region61: #{tpu_custom_call.1} parent=59 // pred_check
          %p1361 = pneg %p197
        $region62: #{tpu_custom_call.1} parent=59 // pred_check_branch
          %1363 = sbr.rel (%p1361) target = $region64
        $region63: #{tpu_custom_call.1} parent=59 // pred_region
          %s1364 = sand.u32 %s182, 1
          %s1365 = scalar_lea.sflag [#allocation7], %s1364
          %s1366 = sand.u32 %s182, 1
          %s1367 = smul.addr %s1366, 8
          %s1368 = scalar_lea.vmem [#allocation8], %s1367
          %1369 = dma.done %s1365, 128
        $region64: #{tpu_custom_call.1} parent=59 // pred_fallthru
          _
      $region60: #{tpu_custom_call.1} parent=5 // pred_fallthru
        _
    $region6: #{tpu_custom_call.1} parent=1 // loop_footer
      %s20 = sadd.s32 1, %s16
    $region7: #{tpu_custom_call.1} parent=1 // loop_footer_branch
      %15 = sbr.rel target = $region3
    $region8: #{tpu_custom_call.1} parent=1 // loop_exit
      _
    %1370 = vsyncpa [#allocation6], 1
    %s1371 = scalar_lea.sflag [#allocation6], 1
    %1372 = vsyncpa %s1371, 1
    %1373 = vsyncpa [#allocation7], 1
    %s1374 = scalar_lea.sflag [#allocation7], 1
    %1375 = vsyncpa %s1374, 1

</llo_original>
